<compile_context>
chip_gen: v7x
topology: tpu7x:2x2x1
jax: 0.10.0
libtpu: 0.0.40
codegen_flags: <defaults>
</compile_context>

<pallas_src>
import functools
import math

import jax
import jax.numpy as jnp
from jax.experimental import pallas as pl
from jax.experimental.pallas import tpu as pltpu


def _full_spec(shape):
    zeros = (0,) * len(shape)
    return pl.BlockSpec(shape, lambda i, _z=zeros: _z)


def _layernorm_f32(x, gamma, beta, eps):
    mean = jnp.mean(x, axis=-1, keepdims=True)
    c = x - mean
    var = jnp.mean(c * c, axis=-1, keepdims=True)
    return c * jax.lax.rsqrt(var + eps) * gamma + beta


# ----------------------------- Pallas kernels -------------------------------

def _layernorm_kernel(x_ref, g_ref, b_ref, o_ref, *, eps):
    x = x_ref[...].astype(jnp.float32)
    o_ref[...] = _layernorm_f32(x, g_ref[...], b_ref[...], eps).astype(o_ref.dtype)


def _bert_layer_kernel(mask_ref, x_ref,
                       qkv_w_ref, qkv_b_ref, ao_w_ref, ao_b_ref,
                       ln1_g_ref, ln1_b_ref,
                       i_w_ref, i_b_ref, o_w_ref, o_b_ref,
                       ln2_g_ref, ln2_b_ref,
                       out_ref, *, batch, seq_len, num_heads, head_dim, scale, eps):
    hidden_size = num_heads * head_dim
    x = x_ref[...].astype(jnp.float32)              # (M, H), M = batch * seq
    mask = mask_ref[...].astype(jnp.float32)        # (B, 1, S) additive mask, f32

    # ---- fused QKV projection: one (M,H)x(H,3H) MXU pass, bf16 in / f32 accumulate ----
    qkv = jnp.dot(x.astype(jnp.bfloat16), qkv_w_ref[...],
                  preferred_element_type=jnp.float32) + qkv_b_ref[...]       # (M, 3H) f32

    # ---- per-head attention fused with the output projection ----
    # concat_h(ctx_h) @ Wo == sum_h ctx_h @ Wo[h*hd:(h+1)*hd, :]
    ao_w = ao_w_ref[...]                            # (H, H) bf16
    attn_out = ao_b_ref[...].astype(jnp.float32)    # (1, H), broadcasts to (M, H)
    for h in range(num_heads):
        q = qkv[:, h * head_dim:(h + 1) * head_dim]
        k = qkv[:, hidden_size + h * head_dim:hidden_size + (h + 1) * head_dim]
        v = qkv[:, 2 * hidden_size + h * head_dim:2 * hidden_size + (h + 1) * head_dim]
        q = q.reshape(batch, seq_len, head_dim).astype(jnp.bfloat16)
        k = k.reshape(batch, seq_len, head_dim).astype(jnp.bfloat16)
        v = v.reshape(batch, seq_len, head_dim).astype(jnp.bfloat16)
        s = jnp.einsum("bqd,bkd->bqk", q, k,
                       preferred_element_type=jnp.float32) * scale          # (B, S, S) f32
        s = s + mask                                                         # f32 mask add
        m = jnp.max(s, axis=-1, keepdims=True)
        p = jnp.exp(s - m)
        denom = jnp.sum(p, axis=-1, keepdims=True)
        p = p * pl.reciprocal(denom, approx=True)                            # EUP, not VALU div
        ctx = jnp.einsum("bqk,bkd->bqd", p.astype(jnp.bfloat16), v,
                         preferred_element_type=jnp.float32)                 # (B, S, hd) f32
        ctx = ctx.reshape(batch * seq_len, head_dim)
        attn_out = attn_out + jnp.dot(ctx.astype(jnp.bfloat16),
                                      ao_w[h * head_dim:(h + 1) * head_dim, :],
                                      preferred_element_type=jnp.float32)

    # ---- residual + LayerNorm 1 (f32) ----
    h1 = _layernorm_f32(attn_out + x, ln1_g_ref[...], ln1_b_ref[...], eps)

    # ---- FFN: up-proj + GELU, down-proj ----
    inter = jnp.dot(h1.astype(jnp.bfloat16), i_w_ref[...],
                    preferred_element_type=jnp.float32) + i_b_ref[...]
    # TODO(synk): HF BERT uses exact (erf) GELU; tanh approximation kept for robust Mosaic lowering.
    inter = jax.nn.gelu(inter, approximate=True)
    ffn = jnp.dot(inter.astype(jnp.bfloat16), o_w_ref[...],
                  preferred_element_type=jnp.float32) + o_b_ref[...]

    # ---- residual + LayerNorm 2 (f32) ----
    h2 = _layernorm_f32(ffn + h1, ln2_g_ref[...], ln2_b_ref[...], eps)
    out_ref[...] = h2.astype(out_ref.dtype)


def _pooler_classifier_kernel(cls_ref, pw_ref, pb_ref, cw_ref, cb_ref, o_ref):
    x = cls_ref[...].astype(jnp.float32)
    pooled = jnp.tanh(jnp.dot(x.astype(jnp.bfloat16), pw_ref[...],
                              preferred_element_type=jnp.float32) + pb_ref[...])
    # nn.Dropout(p=0.3): identity under inference/eval semantics.
    logits = jnp.dot(pooled.astype(jnp.bfloat16), cw_ref[...],
                     preferred_element_type=jnp.float32) + cb_ref[...]
    o_ref[...] = logits.astype(o_ref.dtype)


# ------------------------------ kernel wrappers ------------------------------

def pallas_layernorm(x, gamma, beta, eps=1e-12):
    M, H = x.shape
    return pl.pallas_call(
        functools.partial(_layernorm_kernel, eps=eps),
        out_shape=jax.ShapeDtypeStruct((M, H), x.dtype),
        grid=(1,),
        in_specs=[_full_spec((M, H)), _full_spec((1, H)), _full_spec((1, H))],
        out_specs=_full_spec((M, H)),
    )(x, gamma.reshape(1, H), beta.reshape(1, H))


def pallas_bert_layer(hidden, add_mask, lp, *, batch, seq_len, num_heads, head_dim, eps=1e-12):
    M, H = hidden.shape
    I = lp["i_w"].shape[1]
    kern = functools.partial(
        _bert_layer_kernel, batch=batch, seq_len=seq_len, num_heads=num_heads,
        head_dim=head_dim, scale=1.0 / math.sqrt(head_dim), eps=eps)
    in_arrays = (
        add_mask,                                              # (B, 1, S) f32
        hidden,                                                # (M, H)    f32
        lp["qkv_w"], lp["qkv_b"].reshape(1, 3 * H),
        lp["ao_w"], lp["ao_b"].reshape(1, H),
        lp["ln1_g"].reshape(1, H), lp["ln1_b"].reshape(1, H),
        lp["i_w"], lp["i_b"].reshape(1, I),
        lp["o_w"], lp["o_b"].reshape(1, H),
        lp["ln2_g"].reshape(1, H), lp["ln2_b"].reshape(1, H),
    )
    return pl.pallas_call(
        kern,
        out_shape=jax.ShapeDtypeStruct((M, H), hidden.dtype),
        grid=(1,),
        in_specs=[_full_spec(a.shape) for a in in_arrays],
        out_specs=_full_spec((M, H)),
        compiler_params=pltpu.CompilerParams(dimension_semantics=("parallel",)),
    )(*in_arrays)


def pallas_pooler_classifier(cls_tok, pool_w, pool_b, cls_w, cls_b):
    B, H = cls_tok.shape
    C = cls_w.shape[1]
    return pl.pallas_call(
        _pooler_classifier_kernel,
        out_shape=jax.ShapeDtypeStruct((B, C), jnp.float32),
        grid=(1,),
        in_specs=[_full_spec((B, H)), _full_spec((H, H)), _full_spec((1, H)),
                  _full_spec((H, C)), _full_spec((1, C))],
        out_specs=_full_spec((B, C)),
    )(cls_tok, pool_w, pool_b.reshape(1, H), cls_w, cls_b.reshape(1, C))


# --------------------------- params & forward pass --------------------------

CFG = dict(vocab_size=100, hidden_size=32, num_heads=2, num_layers=2,
           intermediate_size=64, max_position=16, type_vocab_size=2, n_classes=3)


def init_params(key, cfg):
    H, I = cfg["hidden_size"], cfg["intermediate_size"]
    keys = iter(jax.random.split(key, 64))

    def dense(fan_in, fan_out):
        w = 0.02 * jax.random.normal(next(keys), (fan_in, fan_out), jnp.float32)
        # MXU-facing weights stored as bf16; accumulation happens in f32 in-kernel.
        return w.astype(jnp.bfloat16), jnp.zeros((fan_out,), jnp.float32)

    params = {
        "word_emb": 0.02 * jax.random.normal(next(keys), (cfg["vocab_size"], H), jnp.float32),
        "pos_emb": 0.02 * jax.random.normal(next(keys), (cfg["max_position"], H), jnp.float32),
        "type_emb": 0.02 * jax.random.normal(next(keys), (cfg["type_vocab_size"], H), jnp.float32),
        "emb_ln_g": jnp.ones((H,), jnp.float32),
        "emb_ln_b": jnp.zeros((H,), jnp.float32),
        "layers": [],
    }
    for _ in range(cfg["num_layers"]):
        qkv_w, qkv_b = dense(H, 3 * H)     # fused Q|K|V projection panel
        ao_w, ao_b = dense(H, H)
        i_w, i_b = dense(H, I)
        o_w, o_b = dense(I, H)
        params["layers"].append(dict(
            qkv_w=qkv_w, qkv_b=qkv_b, ao_w=ao_w, ao_b=ao_b,
            ln1_g=jnp.ones((H,), jnp.float32), ln1_b=jnp.zeros((H,), jnp.float32),
            i_w=i_w, i_b=i_b, o_w=o_w, o_b=o_b,
            ln2_g=jnp.ones((H,), jnp.float32), ln2_b=jnp.zeros((H,), jnp.float32),
        ))
    pool_w, pool_b = dense(H, H)
    cls_w, cls_b = dense(H, cfg["n_classes"])
    params.update(pool_w=pool_w, pool_b=pool_b, cls_w=cls_w, cls_b=cls_b)
    return params


def bert_classifies_forward(params, input_ids, attention_mask, cfg):
    B, S = input_ids.shape
    H = cfg["hidden_size"]
    nh = cfg["num_heads"]
    hd = H // nh

    # Embeddings: gather + add are JAX glue; LayerNorm runs in Pallas with no fake residual.
    word = jnp.take(params["word_emb"], input_ids, axis=0)            # (B, S, H)
    pos = params["pos_emb"][:S][None, :, :]
    tok = params["type_emb"][0][None, None, :]
    emb = (word + pos + tok).reshape(B * S, H)
    hidden = pallas_layernorm(emb, params["emb_ln_g"], params["emb_ln_b"])

    # Additive attention mask kept per-batch (B, 1, S); broadcast over heads inside kernel.
    add_mask = ((1.0 - attention_mask.astype(jnp.float32)) * -10000.0)[:, None, :]

    for lp in params["layers"]:
        hidden = pallas_bert_layer(hidden, add_mask, lp,
                                   batch=B, seq_len=S, num_heads=nh, head_dim=hd)

    cls_tok = hidden.reshape(B, S, H)[:, 0, :]                        # [CLS] token
    logits = pallas_pooler_classifier(cls_tok, params["pool_w"], params["pool_b"],
                                      params["cls_w"], params["cls_b"])
    return logits


if __name__ == "__main__":
    cfg = CFG
    root = jax.random.PRNGKey(0)
    pkey, ikey = jax.random.split(root)
    params = init_params(pkey, cfg)

    B, S = 2, 8
    input_ids = jax.random.randint(ikey, (B, S), 0, cfg["vocab_size"], dtype=jnp.int32)
    attention_mask = jnp.ones((B, S), dtype=jnp.int32)

    fwd = jax.jit(functools.partial(bert_classifies_forward, cfg=cfg))
    logits = fwd(params, input_ids, attention_mask)
    logits = jax.block_until_ready(logits)
    assert logits.shape == (B, cfg["n_classes"])
    assert bool(jnp.all(jnp.isfinite(logits)))
    print("KERNEL_OK")
</pallas_src>

<mosaic_0001>
module attributes {stable_mosaic.version = 11 : i64} {
  func.func @_pooler_classifier_kernel(%arg0: i32, %arg1: memref<2x32xf32, #tpu.memory_space<vmem>>, %arg2: memref<32x32xbf16, #tpu.memory_space<vmem>>, %arg3: memref<1x32xf32, #tpu.memory_space<vmem>>, %arg4: memref<32x3xbf16, #tpu.memory_space<vmem>>, %arg5: memref<1x3xf32, #tpu.memory_space<vmem>>, %arg6: memref<2x3xf32, #tpu.memory_space<vmem>>) attributes {dimension_semantics = [#tpu.dimension_semantics<arbitrary>], iteration_bounds = array<i64: 1>, scalar_prefetch = 0 : i64, scratch_operands = 0 : i64, tpu.core_type = #tpu.core_type<tc>, window_params = [{pipeline_mode = #tpu.pipeline_mode<synchronous>, transform_indices = @transform_0, window_bounds = array<i64: 2, 32>}, {pipeline_mode = #tpu.pipeline_mode<synchronous>, transform_indices = @transform_1, window_bounds = array<i64: 32, 32>}, {pipeline_mode = #tpu.pipeline_mode<synchronous>, transform_indices = @transform_2, window_bounds = array<i64: 1, 32>}, {pipeline_mode = #tpu.pipeline_mode<synchronous>, transform_indices = @transform_3, window_bounds = array<i64: 32, 3>}, {pipeline_mode = #tpu.pipeline_mode<synchronous>, transform_indices = @transform_4, window_bounds = array<i64: 1, 3>}, {pipeline_mode = #tpu.pipeline_mode<synchronous>, transform_indices = @transform_5, window_bounds = array<i64: 2, 3>}]} {
    %c0 = arith.constant 0 : index
    %c0_0 = arith.constant 0 : index
    %0 = vector.load %arg1[%c0, %c0_0] : memref<2x32xf32, #tpu.memory_space<vmem>>, vector<2x32xf32>
    %1 = arith.truncf %0 : vector<2x32xf32> to vector<2x32xbf16>
    %c0_1 = arith.constant 0 : index
    %c0_2 = arith.constant 0 : index
    %2 = vector.load %arg2[%c0_1, %c0_2] : memref<32x32xbf16, #tpu.memory_space<vmem>>, vector<32x32xbf16>
    %cst = arith.constant dense<0.000000e+00> : vector<2x32xf32>
    %3 = tpu.matmul %1, %2, %cst {dimension_numbers = #tpu.dot_dimension_numbers<[1], [0], [0], [1], [0, 0, 1, 1], [], []>} : vector<2x32xbf16>, vector<32x32xbf16>, vector<2x32xf32> -> vector<2x32xf32>
    %c0_3 = arith.constant 0 : index
    %c0_4 = arith.constant 0 : index
    %4 = vector.load %arg3[%c0_3, %c0_4] : memref<1x32xf32, #tpu.memory_space<vmem>>, vector<1x32xf32>
    %5 = vector.broadcast %4 : vector<1x32xf32> to vector<2x32xf32>
    %6 = arith.addf %3, %5 : vector<2x32xf32>
    %7 = math.tanh %6 : vector<2x32xf32>
    %8 = arith.truncf %7 : vector<2x32xf32> to vector<2x32xbf16>
    %c0_5 = arith.constant 0 : index
    %c0_6 = arith.constant 0 : index
    %9 = vector.load %arg4[%c0_5, %c0_6] : memref<32x3xbf16, #tpu.memory_space<vmem>>, vector<32x3xbf16>
    %cst_7 = arith.constant dense<0.000000e+00> : vector<2x3xf32>
    %10 = tpu.matmul %8, %9, %cst_7 {dimension_numbers = #tpu.dot_dimension_numbers<[1], [0], [0], [1], [0, 0, 1, 1], [], []>} : vector<2x32xbf16>, vector<32x3xbf16>, vector<2x3xf32> -> vector<2x3xf32>
    %c0_8 = arith.constant 0 : index
    %c0_9 = arith.constant 0 : index
    %11 = vector.load %arg5[%c0_8, %c0_9] : memref<1x3xf32, #tpu.memory_space<vmem>>, vector<1x3xf32>
    %12 = vector.broadcast %11 : vector<1x3xf32> to vector<2x3xf32>
    %13 = arith.addf %10, %12 : vector<2x3xf32>
    %c0_10 = arith.constant 0 : index
    %c0_11 = arith.constant 0 : index
    %14 = vector.load %arg6[%c0_10, %c0_11] : memref<2x3xf32, #tpu.memory_space<vmem>>, vector<2x3xf32>
    tpu.vector_store %arg6[%c0_10, %c0_11], %13 {strides = array<i32>} : memref<2x3xf32, #tpu.memory_space<vmem>>, vector<2x3xf32>,
    return
  }
  func.func @transform_0(%arg0: i32) -> (i32, i32) {
    %c0_i32 = arith.constant 0 : i32
    %c0_i32_0 = arith.constant 0 : i32
    %c0_i32_1 = arith.constant 0 : i32
    return %c0_i32, %c0_i32_0 : i32, i32
  }
  func.func @transform_1(%arg0: i32) -> (i32, i32) {
    %c0_i32 = arith.constant 0 : i32
    %c0_i32_0 = arith.constant 0 : i32
    %c0_i32_1 = arith.constant 0 : i32
    return %c0_i32, %c0_i32_0 : i32, i32
  }
  func.func @transform_2(%arg0: i32) -> (i32, i32) {
    %c0_i32 = arith.constant 0 : i32
    %c0_i32_0 = arith.constant 0 : i32
    %c0_i32_1 = arith.constant 0 : i32
    return %c0_i32, %c0_i32_0 : i32, i32
  }
  func.func @transform_3(%arg0: i32) -> (i32, i32) {
    %c0_i32 = arith.constant 0 : i32
    %c0_i32_0 = arith.constant 0 : i32
    %c0_i32_1 = arith.constant 0 : i32
    return %c0_i32, %c0_i32_0 : i32, i32
  }
  func.func @transform_4(%arg0: i32) -> (i32, i32) {
    %c0_i32 = arith.constant 0 : i32
    %c0_i32_0 = arith.constant 0 : i32
    %c0_i32_1 = arith.constant 0 : i32
    return %c0_i32, %c0_i32_0 : i32, i32
  }
  func.func @transform_5(%arg0: i32) -> (i32, i32) {
    %c0_i32 = arith.constant 0 : i32
    %c0_i32_0 = arith.constant 0 : i32
    %c0_i32_1 = arith.constant 0 : i32
    return %c0_i32, %c0_i32_0 : i32, i32
  }
}

module attributes {stable_mosaic.version = 11 : i64} {
  func.func @_layernorm_kernel(%arg0: i32, %arg1: memref<16x32xf32, #tpu.memory_space<vmem>>, %arg2: memref<1x32xf32, #tpu.memory_space<vmem>>, %arg3: memref<1x32xf32, #tpu.memory_space<vmem>>, %arg4: memref<16x32xf32, #tpu.memory_space<vmem>>) attributes {dimension_semantics = [#tpu.dimension_semantics<arbitrary>], iteration_bounds = array<i64: 1>, scalar_prefetch = 0 : i64, scratch_operands = 0 : i64, tpu.core_type = #tpu.core_type<tc>, window_params = [{pipeline_mode = #tpu.pipeline_mode<synchronous>, transform_indices = @transform_0, window_bounds = array<i64: 16, 32>}, {pipeline_mode = #tpu.pipeline_mode<synchronous>, transform_indices = @transform_1, window_bounds = array<i64: 1, 32>}, {pipeline_mode = #tpu.pipeline_mode<synchronous>, transform_indices = @transform_2, window_bounds = array<i64: 1, 32>}, {pipeline_mode = #tpu.pipeline_mode<synchronous>, transform_indices = @transform_3, window_bounds = array<i64: 16, 32>}]} {
    %c0 = arith.constant 0 : index
    %c0_0 = arith.constant 0 : index
    %0 = vector.load %arg1[%c0, %c0_0] : memref<16x32xf32, #tpu.memory_space<vmem>>, vector<16x32xf32>
    %c0_1 = arith.constant 0 : index
    %c0_2 = arith.constant 0 : index
    %1 = vector.load %arg2[%c0_1, %c0_2] : memref<1x32xf32, #tpu.memory_space<vmem>>, vector<1x32xf32>
    %c0_3 = arith.constant 0 : index
    %c0_4 = arith.constant 0 : index
    %2 = vector.load %arg3[%c0_3, %c0_4] : memref<1x32xf32, #tpu.memory_space<vmem>>, vector<1x32xf32>
    %cst = arith.constant dense<0.000000e+00> : vector<16xf32>
    %3 = vector.multi_reduction <add>, %0, %cst [1] : vector<16x32xf32> to vector<16xf32>
    %4 = vector.shape_cast %3 : vector<16xf32> to vector<16x1xf32>
    %cst_5 = arith.constant 3.200000e+01 : f32
    %5 = vector.broadcast %cst_5 : f32 to vector<16x1xf32>
    %6 = arith.divf %4, %5 : vector<16x1xf32>
    %7 = vector.broadcast %6 : vector<16x1xf32> to vector<16x32xf32>
    %8 = arith.subf %0, %7 : vector<16x32xf32>
    %9 = arith.mulf %8, %8 : vector<16x32xf32>
    %cst_6 = arith.constant dense<0.000000e+00> : vector<16xf32>
    %10 = vector.multi_reduction <add>, %9, %cst_6 [1] : vector<16x32xf32> to vector<16xf32>
    %11 = vector.shape_cast %10 : vector<16xf32> to vector<16x1xf32>
    %cst_7 = arith.constant 3.200000e+01 : f32
    %12 = vector.broadcast %cst_7 : f32 to vector<16x1xf32>
    %13 = arith.divf %11, %12 : vector<16x1xf32>
    %cst_8 = arith.constant 9.99999996E-13 : f32
    %14 = vector.broadcast %cst_8 : f32 to vector<16x1xf32>
    %15 = arith.addf %13, %14 : vector<16x1xf32>
    %16 = math.rsqrt %15 : vector<16x1xf32>
    %17 = vector.broadcast %16 : vector<16x1xf32> to vector<16x32xf32>
    %18 = arith.mulf %8, %17 : vector<16x32xf32>
    %19 = vector.broadcast %1 : vector<1x32xf32> to vector<16x32xf32>
    %20 = arith.mulf %18, %19 : vector<16x32xf32>
    %21 = vector.broadcast %2 : vector<1x32xf32> to vector<16x32xf32>
    %22 = arith.addf %20, %21 : vector<16x32xf32>
    %c0_9 = arith.constant 0 : index
    %c0_10 = arith.constant 0 : index
    %23 = vector.load %arg4[%c0_9, %c0_10] : memref<16x32xf32, #tpu.memory_space<vmem>>, vector<16x32xf32>
    tpu.vector_store %arg4[%c0_9, %c0_10], %22 {strides = array<i32>} : memref<16x32xf32, #tpu.memory_space<vmem>>, vector<16x32xf32>,
    return
  }
  func.func @transform_0(%arg0: i32) -> (i32, i32) {
    %c0_i32 = arith.constant 0 : i32
    %c0_i32_0 = arith.constant 0 : i32
    %c0_i32_1 = arith.constant 0 : i32
    return %c0_i32, %c0_i32_0 : i32, i32
  }
  func.func @transform_1(%arg0: i32) -> (i32, i32) {
    %c0_i32 = arith.constant 0 : i32
    %c0_i32_0 = arith.constant 0 : i32
    %c0_i32_1 = arith.constant 0 : i32
    return %c0_i32, %c0_i32_0 : i32, i32
  }
  func.func @transform_2(%arg0: i32) -> (i32, i32) {
    %c0_i32 = arith.constant 0 : i32
    %c0_i32_0 = arith.constant 0 : i32
    %c0_i32_1 = arith.constant 0 : i32
    return %c0_i32, %c0_i32_0 : i32, i32
  }
  func.func @transform_3(%arg0: i32) -> (i32, i32) {
    %c0_i32 = arith.constant 0 : i32
    %c0_i32_0 = arith.constant 0 : i32
    %c0_i32_1 = arith.constant 0 : i32
    return %c0_i32, %c0_i32_0 : i32, i32
  }
}

module attributes {stable_mosaic.version = 11 : i64} {
  func.func @_bert_layer_kernel(%arg0: i32, %arg1: memref<2x1x8xf32, #tpu.memory_space<vmem>>, %arg2: memref<16x32xf32, #tpu.memory_space<vmem>>, %arg3: memref<32x96xbf16, #tpu.memory_space<vmem>>, %arg4: memref<1x96xf32, #tpu.memory_space<vmem>>, %arg5: memref<32x32xbf16, #tpu.memory_space<vmem>>, %arg6: memref<1x32xf32, #tpu.memory_space<vmem>>, %arg7: memref<1x32xf32, #tpu.memory_space<vmem>>, %arg8: memref<1x32xf32, #tpu.memory_space<vmem>>, %arg9: memref<32x64xbf16, #tpu.memory_space<vmem>>, %arg10: memref<1x64xf32, #tpu.memory_space<vmem>>, %arg11: memref<64x32xbf16, #tpu.memory_space<vmem>>, %arg12: memref<1x32xf32, #tpu.memory_space<vmem>>, %arg13: memref<1x32xf32, #tpu.memory_space<vmem>>, %arg14: memref<1x32xf32, #tpu.memory_space<vmem>>, %arg15: memref<16x32xf32, #tpu.memory_space<vmem>>) attributes {dimension_semantics = [#tpu.dimension_semantics<parallel>], iteration_bounds = array<i64: 1>, scalar_prefetch = 0 : i64, scratch_operands = 0 : i64, tpu.core_type = #tpu.core_type<tc>, window_params = [{pipeline_mode = #tpu.pipeline_mode<synchronous>, transform_indices = @transform_0, window_bounds = array<i64: 2, 1, 8>}, {pipeline_mode = #tpu.pipeline_mode<synchronous>, transform_indices = @transform_1, window_bounds = array<i64: 16, 32>}, {pipeline_mode = #tpu.pipeline_mode<synchronous>, transform_indices = @transform_2, window_bounds = array<i64: 32, 96>}, {pipeline_mode = #tpu.pipeline_mode<synchronous>, transform_indices = @transform_3, window_bounds = array<i64: 1, 96>}, {pipeline_mode = #tpu.pipeline_mode<synchronous>, transform_indices = @transform_4, window_bounds = array<i64: 32, 32>}, {pipeline_mode = #tpu.pipeline_mode<synchronous>, transform_indices = @transform_5, window_bounds = array<i64: 1, 32>}, {pipeline_mode = #tpu.pipeline_mode<synchronous>, transform_indices = @transform_6, window_bounds = array<i64: 1, 32>}, {pipeline_mode = #tpu.pipeline_mode<synchronous>, transform_indices = @transform_7, window_bounds = array<i64: 1, 32>}, {pipeline_mode = #tpu.pipeline_mode<synchronous>, transform_indices = @transform_8, window_bounds = array<i64: 32, 64>}, {pipeline_mode = #tpu.pipeline_mode<synchronous>, transform_indices = @transform_9, window_bounds = array<i64: 1, 64>}, {pipeline_mode = #tpu.pipeline_mode<synchronous>, transform_indices = @transform_10, window_bounds = array<i64: 64, 32>}, {pipeline_mode = #tpu.pipeline_mode<synchronous>, transform_indices = @transform_11, window_bounds = array<i64: 1, 32>}, {pipeline_mode = #tpu.pipeline_mode<synchronous>, transform_indices = @transform_12, window_bounds = array<i64: 1, 32>}, {pipeline_mode = #tpu.pipeline_mode<synchronous>, transform_indices = @transform_13, window_bounds = array<i64: 1, 32>}, {pipeline_mode = #tpu.pipeline_mode<synchronous>, transform_indices = @transform_14, window_bounds = array<i64: 16, 32>}]} {
    %c0 = arith.constant 0 : index
    %c0_0 = arith.constant 0 : index
    %0 = vector.load %arg2[%c0, %c0_0] : memref<16x32xf32, #tpu.memory_space<vmem>>, vector<16x32xf32>
    %c0_1 = arith.constant 0 : index
    %c0_2 = arith.constant 0 : index
    %c0_3 = arith.constant 0 : index
    %1 = vector.load %arg1[%c0_1, %c0_2, %c0_3] : memref<2x1x8xf32, #tpu.memory_space<vmem>>, vector<2x1x8xf32>
    %2 = arith.truncf %0 : vector<16x32xf32> to vector<16x32xbf16>
    %c0_4 = arith.constant 0 : index
    %c0_5 = arith.constant 0 : index
    %3 = vector.load %arg3[%c0_4, %c0_5] : memref<32x96xbf16, #tpu.memory_space<vmem>>, vector<32x96xbf16>
    %cst = arith.constant dense<0.000000e+00> : vector<16x96xf32>
    %4 = tpu.matmul %2, %3, %cst {dimension_numbers = #tpu.dot_dimension_numbers<[1], [0], [0], [1], [0, 0, 1, 1], [], []>} : vector<16x32xbf16>, vector<32x96xbf16>, vector<16x96xf32> -> vector<16x96xf32>
    %c0_6 = arith.constant 0 : index
    %c0_7 = arith.constant 0 : index
    %5 = vector.load %arg4[%c0_6, %c0_7] : memref<1x96xf32, #tpu.memory_space<vmem>>, vector<1x96xf32>
    %6 = vector.broadcast %5 : vector<1x96xf32> to vector<16x96xf32>
    %7 = arith.addf %4, %6 : vector<16x96xf32>
    %c0_8 = arith.constant 0 : index
    %c0_9 = arith.constant 0 : index
    %8 = vector.load %arg5[%c0_8, %c0_9] : memref<32x32xbf16, #tpu.memory_space<vmem>>, vector<32x32xbf16>
    %c0_10 = arith.constant 0 : index
    %c0_11 = arith.constant 0 : index
    %9 = vector.load %arg6[%c0_10, %c0_11] : memref<1x32xf32, #tpu.memory_space<vmem>>, vector<1x32xf32>
    %10 = vector.extract_strided_slice %7 {offsets = [0, 0], sizes = [16, 16], strides = [1, 1]} : vector<16x96xf32> to vector<16x16xf32>
    %11 = vector.extract_strided_slice %7 {offsets = [0, 32], sizes = [16, 16], strides = [1, 1]} : vector<16x96xf32> to vector<16x16xf32>
    %12 = vector.extract_strided_slice %7 {offsets = [0, 64], sizes = [16, 16], strides = [1, 1]} : vector<16x96xf32> to vector<16x16xf32>
    %13 = vector.shape_cast %10 : vector<16x16xf32> to vector<2x8x16xf32>
    %14 = arith.truncf %13 : vector<2x8x16xf32> to vector<2x8x16xbf16>
    %15 = vector.shape_cast %11 : vector<16x16xf32> to vector<2x8x16xf32>
    %16 = arith.truncf %15 : vector<2x8x16xf32> to vector<2x8x16xbf16>
    %17 = vector.shape_cast %12 : vector<16x16xf32> to vector<2x8x16xf32>
    %18 = arith.truncf %17 : vector<2x8x16xf32> to vector<2x8x16xbf16>
    "tpu.trace_start"() <{level = 10 : i32, message = "bqd,bkd->bqk"}> : () -> ()
    %cst_12 = arith.constant dense<0.000000e+00> : vector<2x8x8xf32>
    %19 = tpu.matmul %14, %16, %cst_12 {dimension_numbers = #tpu.dot_dimension_numbers<[2], [2], [1], [1], [0, 0, 0, 1, 1, 1], [0], [0]>} : vector<2x8x16xbf16>, vector<2x8x16xbf16>, vector<2x8x8xf32> -> vector<2x8x8xf32>
    "tpu.trace_stop"() : () -> ()
    %cst_13 = arith.constant 2.500000e-01 : f32
    %20 = vector.broadcast %cst_13 : f32 to vector<2x8x8xf32>
    %21 = arith.mulf %19, %20 : vector<2x8x8xf32>
    %22 = vector.broadcast %1 : vector<2x1x8xf32> to vector<2x8x8xf32>
    %23 = arith.addf %21, %22 : vector<2x8x8xf32>
    %cst_14 = arith.constant dense<0xFF800000> : vector<2x8xf32>
    %24 = vector.multi_reduction <maximumf>, %23, %cst_14 [2] : vector<2x8x8xf32> to vector<2x8xf32>
    %25 = vector.shape_cast %24 : vector<2x8xf32> to vector<2x8x1xf32>
    %26 = vector.broadcast %25 : vector<2x8x1xf32> to vector<2x8x8xf32>
    %27 = arith.subf %23, %26 : vector<2x8x8xf32>
    %28 = math.exp %27 : vector<2x8x8xf32>
    %cst_15 = arith.constant dense<0.000000e+00> : vector<2x8xf32>
    %29 = vector.multi_reduction <add>, %28, %cst_15 [2] : vector<2x8x8xf32> to vector<2x8xf32>
    %30 = vector.shape_cast %29 : vector<2x8xf32> to vector<2x8x1xf32>
    %31 = tpu.reciprocal %30 {approx = true} : vector<2x8x1xf32> -> vector<2x8x1xf32>
    %32 = vector.broadcast %31 : vector<2x8x1xf32> to vector<2x8x8xf32>
    %33 = arith.mulf %28, %32 : vector<2x8x8xf32>
    %34 = arith.truncf %33 : vector<2x8x8xf32> to vector<2x8x8xbf16>
    "tpu.trace_start"() <{level = 10 : i32, message = "bqk,bkd->bqd"}> : () -> ()
    %cst_16 = arith.constant dense<0.000000e+00> : vector<2x8x16xf32>
    %35 = tpu.matmul %34, %18, %cst_16 {dimension_numbers = #tpu.dot_dimension_numbers<[2], [1], [1], [2], [0, 0, 0, 1, 1, 2], [0], [0]>} : vector<2x8x8xbf16>, vector<2x8x16xbf16>, vector<2x8x16xf32> -> vector<2x8x16xf32>
    "tpu.trace_stop"() : () -> ()
    %36 = vector.shape_cast %35 : vector<2x8x16xf32> to vector<16x16xf32>
    %37 = arith.truncf %36 : vector<16x16xf32> to vector<16x16xbf16>
    %38 = vector.extract_strided_slice %8 {offsets = [0, 0], sizes = [16, 32], strides = [1, 1]} : vector<32x32xbf16> to vector<16x32xbf16>
    %cst_17 = arith.constant dense<0.000000e+00> : vector<16x32xf32>
    %39 = tpu.matmul %37, %38, %cst_17 {dimension_numbers = #tpu.dot_dimension_numbers<[1], [0], [0], [1], [0, 0, 1, 1], [], []>} : vector<16x16xbf16>, vector<16x32xbf16>, vector<16x32xf32> -> vector<16x32xf32>
    %40 = vector.broadcast %9 : vector<1x32xf32> to vector<16x32xf32>
    %41 = arith.addf %40, %39 : vector<16x32xf32>
    %42 = vector.extract_strided_slice %7 {offsets = [0, 16], sizes = [16, 16], strides = [1, 1]} : vector<16x96xf32> to vector<16x16xf32>
    %43 = vector.extract_strided_slice %7 {offsets = [0, 48], sizes = [16, 16], strides = [1, 1]} : vector<16x96xf32> to vector<16x16xf32>
    %44 = vector.extract_strided_slice %7 {offsets = [0, 80], sizes = [16, 16], strides = [1, 1]} : vector<16x96xf32> to vector<16x16xf32>
    %45 = vector.shape_cast %42 : vector<16x16xf32> to vector<2x8x16xf32>
    %46 = arith.truncf %45 : vector<2x8x16xf32> to vector<2x8x16xbf16>
    %47 = vector.shape_cast %43 : vector<16x16xf32> to vector<2x8x16xf32>
    %48 = arith.truncf %47 : vector<2x8x16xf32> to vector<2x8x16xbf16>
    %49 = vector.shape_cast %44 : vector<16x16xf32> to vector<2x8x16xf32>
    %50 = arith.truncf %49 : vector<2x8x16xf32> to vector<2x8x16xbf16>
    "tpu.trace_start"() <{level = 10 : i32, message = "bqd,bkd->bqk"}> : () -> ()
    %cst_18 = arith.constant dense<0.000000e+00> : vector<2x8x8xf32>
    %51 = tpu.matmul %46, %48, %cst_18 {dimension_numbers = #tpu.dot_dimension_numbers<[2], [2], [1], [1], [0, 0, 0, 1, 1, 1], [0], [0]>} : vector<2x8x16xbf16>, vector<2x8x16xbf16>, vector<2x8x8xf32> -> vector<2x8x8xf32>
    "tpu.trace_stop"() : () -> ()
    %cst_19 = arith.constant 2.500000e-01 : f32
    %52 = vector.broadcast %cst_19 : f32 to vector<2x8x8xf32>
    %53 = arith.mulf %51, %52 : vector<2x8x8xf32>
    %54 = vector.broadcast %1 : vector<2x1x8xf32> to vector<2x8x8xf32>
    %55 = arith.addf %53, %54 : vector<2x8x8xf32>
    %cst_20 = arith.constant dense<0xFF800000> : vector<2x8xf32>
    %56 = vector.multi_reduction <maximumf>, %55, %cst_20 [2] : vector<2x8x8xf32> to vector<2x8xf32>
    %57 = vector.shape_cast %56 : vector<2x8xf32> to vector<2x8x1xf32>
    %58 = vector.broadcast %57 : vector<2x8x1xf32> to vector<2x8x8xf32>
    %59 = arith.subf %55, %58 : vector<2x8x8xf32>
    %60 = math.exp %59 : vector<2x8x8xf32>
    %cst_21 = arith.constant dense<0.000000e+00> : vector<2x8xf32>
    %61 = vector.multi_reduction <add>, %60, %cst_21 [2] : vector<2x8x8xf32> to vector<2x8xf32>
    %62 = vector.shape_cast %61 : vector<2x8xf32> to vector<2x8x1xf32>
    %63 = tpu.reciprocal %62 {approx = true} : vector<2x8x1xf32> -> vector<2x8x1xf32>
    %64 = vector.broadcast %63 : vector<2x8x1xf32> to vector<2x8x8xf32>
    %65 = arith.mulf %60, %64 : vector<2x8x8xf32>
    %66 = arith.truncf %65 : vector<2x8x8xf32> to vector<2x8x8xbf16>
    "tpu.trace_start"() <{level = 10 : i32, message = "bqk,bkd->bqd"}> : () -> ()
    %cst_22 = arith.constant dense<0.000000e+00> : vector<2x8x16xf32>
    %67 = tpu.matmul %66, %50, %cst_22 {dimension_numbers = #tpu.dot_dimension_numbers<[2], [1], [1], [2], [0, 0, 0, 1, 1, 2], [0], [0]>} : vector<2x8x8xbf16>, vector<2x8x16xbf16>, vector<2x8x16xf32> -> vector<2x8x16xf32>
    "tpu.trace_stop"() : () -> ()
    %68 = vector.shape_cast %67 : vector<2x8x16xf32> to vector<16x16xf32>
    %69 = arith.truncf %68 : vector<16x16xf32> to vector<16x16xbf16>
    %70 = vector.extract_strided_slice %8 {offsets = [16, 0], sizes = [16, 32], strides = [1, 1]} : vector<32x32xbf16> to vector<16x32xbf16>
    %cst_23 = arith.constant dense<0.000000e+00> : vector<16x32xf32>
    %71 = tpu.matmul %69, %70, %cst_23 {dimension_numbers = #tpu.dot_dimension_numbers<[1], [0], [0], [1], [0, 0, 1, 1], [], []>} : vector<16x16xbf16>, vector<16x32xbf16>, vector<16x32xf32> -> vector<16x32xf32>
    %72 = arith.addf %41, %71 : vector<16x32xf32>
    %73 = arith.addf %72, %0 : vector<16x32xf32>
    %c0_24 = arith.constant 0 : index
    %c0_25 = arith.constant 0 : index
    %74 = vector.load %arg7[%c0_24, %c0_25] : memref<1x32xf32, #tpu.memory_space<vmem>>, vector<1x32xf32>
    %c0_26 = arith.constant 0 : index
    %c0_27 = arith.constant 0 : index
    %75 = vector.load %arg8[%c0_26, %c0_27] : memref<1x32xf32, #tpu.memory_space<vmem>>, vector<1x32xf32>
    %cst_28 = arith.constant dense<0.000000e+00> : vector<16xf32>
    %76 = vector.multi_reduction <add>, %73, %cst_28 [1] : vector<16x32xf32> to vector<16xf32>
    %77 = vector.shape_cast %76 : vector<16xf32> to vector<16x1xf32>
    %cst_29 = arith.constant 3.200000e+01 : f32
    %78 = vector.broadcast %cst_29 : f32 to vector<16x1xf32>
    %79 = arith.divf %77, %78 : vector<16x1xf32>
    %80 = vector.broadcast %79 : vector<16x1xf32> to vector<16x32xf32>
    %81 = arith.subf %73, %80 : vector<16x32xf32>
    %82 = arith.mulf %81, %81 : vector<16x32xf32>
    %cst_30 = arith.constant dense<0.000000e+00> : vector<16xf32>
    %83 = vector.multi_reduction <add>, %82, %cst_30 [1] : vector<16x32xf32> to vector<16xf32>
    %84 = vector.shape_cast %83 : vector<16xf32> to vector<16x1xf32>
    %cst_31 = arith.constant 3.200000e+01 : f32
    %85 = vector.broadcast %cst_31 : f32 to vector<16x1xf32>
    %86 = arith.divf %84, %85 : vector<16x1xf32>
    %cst_32 = arith.constant 9.99999996E-13 : f32
    %87 = vector.broadcast %cst_32 : f32 to vector<16x1xf32>
    %88 = arith.addf %86, %87 : vector<16x1xf32>
    %89 = math.rsqrt %88 : vector<16x1xf32>
    %90 = vector.broadcast %89 : vector<16x1xf32> to vector<16x32xf32>
    %91 = arith.mulf %81, %90 : vector<16x32xf32>
    %92 = vector.broadcast %74 : vector<1x32xf32> to vector<16x32xf32>
    %93 = arith.mulf %91, %92 : vector<16x32xf32>
    %94 = vector.broadcast %75 : vector<1x32xf32> to vector<16x32xf32>
    %95 = arith.addf %93, %94 : vector<16x32xf32>
    %96 = arith.truncf %95 : vector<16x32xf32> to vector<16x32xbf16>
    %c0_33 = arith.constant 0 : index
    %c0_34 = arith.constant 0 : index
    %97 = vector.load %arg9[%c0_33, %c0_34] : memref<32x64xbf16, #tpu.memory_space<vmem>>, vector<32x64xbf16>
    %cst_35 = arith.constant dense<0.000000e+00> : vector<16x64xf32>
    %98 = tpu.matmul %96, %97, %cst_35 {dimension_numbers = #tpu.dot_dimension_numbers<[1], [0], [0], [1], [0, 0, 1, 1], [], []>} : vector<16x32xbf16>, vector<32x64xbf16>, vector<16x64xf32> -> vector<16x64xf32>
    %c0_36 = arith.constant 0 : index
    %c0_37 = arith.constant 0 : index
    %99 = vector.load %arg10[%c0_36, %c0_37] : memref<1x64xf32, #tpu.memory_space<vmem>>, vector<1x64xf32>
    %100 = vector.broadcast %99 : vector<1x64xf32> to vector<16x64xf32>
    %101 = arith.addf %98, %100 : vector<16x64xf32>
    %102 = arith.mulf %101, %101 : vector<16x64xf32>
    %103 = arith.mulf %101, %102 : vector<16x64xf32>
    %cst_38 = arith.constant 4.471500e-02 : f32
    %104 = vector.broadcast %cst_38 : f32 to vector<16x64xf32>
    %105 = arith.mulf %104, %103 : vector<16x64xf32>
    %106 = arith.addf %101, %105 : vector<16x64xf32>
    %cst_39 = arith.constant 0.797884583 : f32
    %107 = vector.broadcast %cst_39 : f32 to vector<16x64xf32>
    %108 = arith.mulf %107, %106 : vector<16x64xf32>
    %109 = math.tanh %108 : vector<16x64xf32>
    %cst_40 = arith.constant 1.000000e+00 : f32
    %110 = vector.broadcast %cst_40 : f32 to vector<16x64xf32>
    %111 = arith.addf %110, %109 : vector<16x64xf32>
    %cst_41 = arith.constant 5.000000e-01 : f32
    %112 = vector.broadcast %cst_41 : f32 to vector<16x64xf32>
    %113 = arith.mulf %112, %111 : vector<16x64xf32>
    %114 = arith.mulf %101, %113 : vector<16x64xf32>
    %115 = arith.truncf %114 : vector<16x64xf32> to vector<16x64xbf16>
    %c0_42 = arith.constant 0 : index
    %c0_43 = arith.constant 0 : index
    %116 = vector.load %arg11[%c0_42, %c0_43] : memref<64x32xbf16, #tpu.memory_space<vmem>>, vector<64x32xbf16>
    %cst_44 = arith.constant dense<0.000000e+00> : vector<16x32xf32>
    %117 = tpu.matmul %115, %116, %cst_44 {dimension_numbers = #tpu.dot_dimension_numbers<[1], [0], [0], [1], [0, 0, 1, 1], [], []>} : vector<16x64xbf16>, vector<64x32xbf16>, vector<16x32xf32> -> vector<16x32xf32>
    %c0_45 = arith.constant 0 : index
    %c0_46 = arith.constant 0 : index
    %118 = vector.load %arg12[%c0_45, %c0_46] : memref<1x32xf32, #tpu.memory_space<vmem>>, vector<1x32xf32>
    %119 = vector.broadcast %118 : vector<1x32xf32> to vector<16x32xf32>
    %120 = arith.addf %117, %119 : vector<16x32xf32>
    %121 = arith.addf %120, %95 : vector<16x32xf32>
    %c0_47 = arith.constant 0 : index
    %c0_48 = arith.constant 0 : index
    %122 = vector.load %arg13[%c0_47, %c0_48] : memref<1x32xf32, #tpu.memory_space<vmem>>, vector<1x32xf32>
    %c0_49 = arith.constant 0 : index
    %c0_50 = arith.constant 0 : index
    %123 = vector.load %arg14[%c0_49, %c0_50] : memref<1x32xf32, #tpu.memory_space<vmem>>, vector<1x32xf32>
    %cst_51 = arith.constant dense<0.000000e+00> : vector<16xf32>
    %124 = vector.multi_reduction <add>, %121, %cst_51 [1] : vector<16x32xf32> to vector<16xf32>
    %125 = vector.shape_cast %124 : vector<16xf32> to vector<16x1xf32>
    %cst_52 = arith.constant 3.200000e+01 : f32
    %126 = vector.broadcast %cst_52 : f32 to vector<16x1xf32>
    %127 = arith.divf %125, %126 : vector<16x1xf32>
    %128 = vector.broadcast %127 : vector<16x1xf32> to vector<16x32xf32>
    %129 = arith.subf %121, %128 : vector<16x32xf32>
    %130 = arith.mulf %129, %129 : vector<16x32xf32>
    %cst_53 = arith.constant dense<0.000000e+00> : vector<16xf32>
    %131 = vector.multi_reduction <add>, %130, %cst_53 [1] : vector<16x32xf32> to vector<16xf32>
    %132 = vector.shape_cast %131 : vector<16xf32> to vector<16x1xf32>
    %cst_54 = arith.constant 3.200000e+01 : f32
    %133 = vector.broadcast %cst_54 : f32 to vector<16x1xf32>
    %134 = arith.divf %132, %133 : vector<16x1xf32>
    %cst_55 = arith.constant 9.99999996E-13 : f32
    %135 = vector.broadcast %cst_55 : f32 to vector<16x1xf32>
    %136 = arith.addf %134, %135 : vector<16x1xf32>
    %137 = math.rsqrt %136 : vector<16x1xf32>
    %138 = vector.broadcast %137 : vector<16x1xf32> to vector<16x32xf32>
    %139 = arith.mulf %129, %138 : vector<16x32xf32>
    %140 = vector.broadcast %122 : vector<1x32xf32> to vector<16x32xf32>
    %141 = arith.mulf %139, %140 : vector<16x32xf32>
    %142 = vector.broadcast %123 : vector<1x32xf32> to vector<16x32xf32>
    %143 = arith.addf %141, %142 : vector<16x32xf32>
    %c0_56 = arith.constant 0 : index
    %c0_57 = arith.constant 0 : index
    %144 = vector.load %arg15[%c0_56, %c0_57] : memref<16x32xf32, #tpu.memory_space<vmem>>, vector<16x32xf32>
    tpu.vector_store %arg15[%c0_56, %c0_57], %143 {strides = array<i32>} : memref<16x32xf32, #tpu.memory_space<vmem>>, vector<16x32xf32>,
    return
  }
  func.func @transform_0(%arg0: i32) -> (i32, i32, i32) {
    %c0_i32 = arith.constant 0 : i32
    %c0_i32_0 = arith.constant 0 : i32
    %c0_i32_1 = arith.constant 0 : i32
    %c0_i32_2 = arith.constant 0 : i32
    return %c0_i32, %c0_i32_0, %c0_i32_1 : i32, i32, i32
  }
  func.func @transform_1(%arg0: i32) -> (i32, i32) {
    %c0_i32 = arith.constant 0 : i32
    %c0_i32_0 = arith.constant 0 : i32
    %c0_i32_1 = arith.constant 0 : i32
    return %c0_i32, %c0_i32_0 : i32, i32
  }
  func.func @transform_2(%arg0: i32) -> (i32, i32) {
    %c0_i32 = arith.constant 0 : i32
    %c0_i32_0 = arith.constant 0 : i32
    %c0_i32_1 = arith.constant 0 : i32
    return %c0_i32, %c0_i32_0 : i32, i32
  }
  func.func @transform_3(%arg0: i32) -> (i32, i32) {
    %c0_i32 = arith.constant 0 : i32
    %c0_i32_0 = arith.constant 0 : i32
    %c0_i32_1 = arith.constant 0 : i32
    return %c0_i32, %c0_i32_0 : i32, i32
  }
  func.func @transform_4(%arg0: i32) -> (i32, i32) {
    %c0_i32 = arith.constant 0 : i32
    %c0_i32_0 = arith.constant 0 : i32
    %c0_i32_1 = arith.constant 0 : i32
    return %c0_i32, %c0_i32_0 : i32, i32
  }
  func.func @transform_5(%arg0: i32) -> (i32, i32) {
    %c0_i32 = arith.constant 0 : i32
    %c0_i32_0 = arith.constant 0 : i32
    %c0_i32_1 = arith.constant 0 : i32
    return %c0_i32, %c0_i32_0 : i32, i32
  }
  func.func @transform_6(%arg0: i32) -> (i32, i32) {
    %c0_i32 = arith.constant 0 : i32
    %c0_i32_0 = arith.constant 0 : i32
    %c0_i32_1 = arith.constant 0 : i32
    return %c0_i32, %c0_i32_0 : i32, i32
  }
  func.func @transform_7(%arg0: i32) -> (i32, i32) {
    %c0_i32 = arith.constant 0 : i32
    %c0_i32_0 = arith.constant 0 : i32
    %c0_i32_1 = arith.constant 0 : i32
    return %c0_i32, %c0_i32_0 : i32, i32
  }
  func.func @transform_8(%arg0: i32) -> (i32, i32) {
    %c0_i32 = arith.constant 0 : i32
    %c0_i32_0 = arith.constant 0 : i32
    %c0_i32_1 = arith.constant 0 : i32
    return %c0_i32, %c0_i32_0 : i32, i32
  }
  func.func @transform_9(%arg0: i32) -> (i32, i32) {
    %c0_i32 = arith.constant 0 : i32
    %c0_i32_0 = arith.constant 0 : i32
    %c0_i32_1 = arith.constant 0 : i32
    return %c0_i32, %c0_i32_0 : i32, i32
  }
  func.func @transform_10(%arg0: i32) -> (i32, i32) {
    %c0_i32 = arith.constant 0 : i32
    %c0_i32_0 = arith.constant 0 : i32
    %c0_i32_1 = arith.constant 0 : i32
    return %c0_i32, %c0_i32_0 : i32, i32
  }
  func.func @transform_11(%arg0: i32) -> (i32, i32) {
    %c0_i32 = arith.constant 0 : i32
    %c0_i32_0 = arith.constant 0 : i32
    %c0_i32_1 = arith.constant 0 : i32
    return %c0_i32, %c0_i32_0 : i32, i32
  }
  func.func @transform_12(%arg0: i32) -> (i32, i32) {
    %c0_i32 = arith.constant 0 : i32
    %c0_i32_0 = arith.constant 0 : i32
    %c0_i32_1 = arith.constant 0 : i32
    return %c0_i32, %c0_i32_0 : i32, i32
  }
  func.func @transform_13(%arg0: i32) -> (i32, i32) {
    %c0_i32 = arith.constant 0 : i32
    %c0_i32_0 = arith.constant 0 : i32
    %c0_i32_1 = arith.constant 0 : i32
    return %c0_i32, %c0_i32_0 : i32, i32
  }
  func.func @transform_14(%arg0: i32) -> (i32, i32) {
    %c0_i32 = arith.constant 0 : i32
    %c0_i32_0 = arith.constant 0 : i32
    %c0_i32_1 = arith.constant 0 : i32
    return %c0_i32, %c0_i32_0 : i32, i32
  }
}

</mosaic_0001>

<llo_original>
// kernel: bert_classifies_forward.4
$region0: #{bert_classifies_forward.4}
  #allocation0 [shape = 'u32[]', space=smem, size = 0x4, offset = 0x4, fixed_abs, tag = 'smem constant byte address 0x4 - core index']
  #allocation1 [shape = 'u32[144,128]{1,0:T(1,128)}', space=vmem, size = 0x12000, scoped, tag = 'internal scratch']
  %s0 = inlined_call_operand.vmem [shape: f32[16,32], index: 0, kind: input, shape index: {}]
  %s1 = inlined_call_operand.vmem [shape: f32[1,32], index: 1, kind: input, shape index: {}]
  %s2 = inlined_call_operand.vmem [shape: f32[1,32], index: 2, kind: input, shape index: {}]
  %s3 = inlined_call_operand.vmem [shape: f32[16,32], index: 3, kind: output, shape index: {}]
  %s4 = sld [smem:[#allocation0]]
  $region22: #{bert_classifies_forward.4} parent=0
    _
  %s6 = ssub.s32 1, %s4
  %s7 = scalar_select 0, %s6, %s4
  // Predicated region
  $region2: #{bert_classifies_forward.4} parent=0 // pred_check
    _
  $region3: #{bert_classifies_forward.4} parent=0 // pred_check_branch
    %9 = sbr.rel (0) target = $region5
  $region4: #{bert_classifies_forward.4} parent=0 // pred_region
    _
  $region5: #{bert_classifies_forward.4} parent=0 // pred_fallthru
    _
  // Predicated region
  $region6: #{bert_classifies_forward.4} parent=0 // pred_check
    _
  $region7: #{bert_classifies_forward.4} parent=0 // pred_check_branch
    %11 = sbr.rel (0) target = $region9
  $region8: #{bert_classifies_forward.4} parent=0 // pred_region
    _
  $region9: #{bert_classifies_forward.4} parent=0 // pred_fallthru
    _
  // Predicated region
  $region10: #{bert_classifies_forward.4} parent=0 // pred_check
    _
  $region11: #{bert_classifies_forward.4} parent=0 // pred_check_branch
    %13 = sbr.rel (0) target = $region13
  $region12: #{bert_classifies_forward.4} parent=0 // pred_region
    _
  $region13: #{bert_classifies_forward.4} parent=0 // pred_fallthru
    _
  %v14 = vld [vmem:[%s0] sm:$0xff]
  %v15 = vld [vmem:[%s0 + $0x8] sm:$0xff]
  %v16 = vld [vmem:[%s1] sm:$0x1]
  %v17 = vld [vmem:[%s2] sm:$0x1]
  %vm18 = vcmask 261120
  %v19 = vsel %vm18, %v14, 0.0
  %20 = vadd.xlane.f32.xlu0 %v19
  %v21 = vpop.xlane.xlu0 %20
  %v22 = vsel %vm18, %v15, 0.0
  %23 = vadd.xlane.f32.xlu0 %v22
  %v24 = vpop.xlane.xlu0 %23
  %v25 = vrcp.pop 32.0
  %v26 = vmul.f32 %v21, %v25
  %v27 = vmul.f32 %v24, %v25
  %v28 = vsub.f32 %v14, %v26
  %v29 = vsub.f32 %v15, %v27
  %v30 = vmul.f32 %v28, %v28
  %v31 = vmul.f32 %v29, %v29
  %v32 = vsel %vm18, %v30, 0.0
  %33 = vadd.xlane.f32.xlu0 %v32
  %v34 = vpop.xlane.xlu0 %33
  %v35 = vsel %vm18, %v31, 0.0
  %36 = vadd.xlane.f32.xlu0 %v35
  %v37 = vpop.xlane.xlu0 %36
  %v38 = vmul.f32 %v34, %v25
  %v39 = vmul.f32 %v37, %v25
  %v40 = vadd.f32 %v38, 1e-12
  %v41 = vadd.f32 %v39, 1e-12
  %v42 = vrsqrt.pop %v40
  %v43 = vrsqrt.pop %v41
  %v44 = vmul.f32 %v28, %v42
  %v45 = vmul.f32 %v29, %v43
  %v47 = vlaneseq
  %v48 = vshrl.u32 %v47, 7
  %v49 = vsub.s32 0, %v48
  %v50 = vrot.slane %v16, %v49
  %v52 = vmul.f32 %v44, %v50
  %v53 = vmul.f32 %v45, %v50
  %v55 = vlaneseq
  %v56 = vshrl.u32 %v55, 7
  %v57 = vsub.s32 0, %v56
  %v58 = vrot.slane %v17, %v57
  %v60 = vadd.f32 %v52, %v58
  %v61 = vadd.f32 %v53, %v58
  %62 = vst.msk [vmem:[%s3] sm:$0xff] %vm18, %v60
  %63 = vst.msk [vmem:[%s3 + $0x8] sm:$0xff] %vm18, %v61
  // Predicated region
  $region14: #{bert_classifies_forward.4} parent=0 // pred_check
    _
  $region15: #{bert_classifies_forward.4} parent=0 // pred_check_branch
    %65 = sbr.rel (0) target = $region17
  $region16: #{bert_classifies_forward.4} parent=0 // pred_region
    _
  $region17: #{bert_classifies_forward.4} parent=0 // pred_fallthru
    _
  // Predicated region
  $region18: #{bert_classifies_forward.4} parent=0 // pred_check
    _
  $region19: #{bert_classifies_forward.4} parent=0 // pred_check_branch
    %67 = sbr.rel (0) target = $region21
  $region20: #{bert_classifies_forward.4} parent=0 // pred_region
    _
  $region21: #{bert_classifies_forward.4} parent=0 // pred_fallthru
    _

// kernel: bert_classifies_forward.7
$region0: #{bert_classifies_forward.7}
  #allocation0 [shape = 'u32[]', space=smem, size = 0x4, offset = 0x4, fixed_abs, tag = 'smem constant byte address 0x4 - core index']
  #allocation1 [shape = 'u32[144,128]{1,0:T(1,128)}', space=vmem, size = 0x12000, scoped, tag = 'internal scratch']
  %s0 = inlined_call_operand.vmem [shape: f32[2,32], index: 0, kind: input, shape index: {}]
  %s1 = inlined_call_operand.vmem [shape: bf16[32,32], index: 1, kind: input, shape index: {}]
  %s2 = inlined_call_operand.vmem [shape: f32[1,32], index: 2, kind: input, shape index: {}]
  %s3 = inlined_call_operand.vmem [shape: bf16[32,3], index: 3, kind: input, shape index: {}]
  %s4 = inlined_call_operand.vmem [shape: f32[1,3], index: 4, kind: input, shape index: {}]
  %s5 = inlined_call_operand.hbm [shape: f32[2,3], index: 5, kind: output, shape index: {}]
  %s6 = sld [smem:[#allocation0]]
  $region30: #{bert_classifies_forward.7} parent=0
    _
  %s8 = ssub.s32 1, %s6
  %s9 = scalar_select 0, %s8, %s6
  $region1: #{bert_classifies_forward.7} parent=0
    #allocation2 [shape = 'u8[1024]{0}', space=vmem, size = 0x400, scoped, tag = 'output window, operand 0, single buffered']
    #allocation3 [shape = 's32[1]{0}', space=sflag, size = 0x4, scoped, tag = 'scoped memory for bert_classifies_forward.7']
    %10 = vsyncpa [#allocation3], 0
    // Predicated region
    $region2: #{bert_classifies_forward.7} parent=1 // pred_check
      _
    $region3: #{bert_classifies_forward.7} parent=1 // pred_check_branch
      %12 = sbr.rel (0) target = $region5
    $region4: #{bert_classifies_forward.7} parent=1 // pred_region
      _
    $region5: #{bert_classifies_forward.7} parent=1 // pred_fallthru
      _
    // Predicated region
    $region6: #{bert_classifies_forward.7} parent=1 // pred_check
      _
    $region7: #{bert_classifies_forward.7} parent=1 // pred_check_branch
      %14 = sbr.rel (0) target = $region9
    $region8: #{bert_classifies_forward.7} parent=1 // pred_region
      _
    $region9: #{bert_classifies_forward.7} parent=1 // pred_fallthru
      _
    // Predicated region
    $region10: #{bert_classifies_forward.7} parent=1 // pred_check
      _
    $region11: #{bert_classifies_forward.7} parent=1 // pred_check_branch
      %16 = sbr.rel (0) target = $region13
    $region12: #{bert_classifies_forward.7} parent=1 // pred_region
      _
    $region13: #{bert_classifies_forward.7} parent=1 // pred_fallthru
      _
    // Predicated region
    $region14: #{bert_classifies_forward.7} parent=1 // pred_check
      _
    $region15: #{bert_classifies_forward.7} parent=1 // pred_check_branch
      %18 = sbr.rel (0) target = $region17
    $region16: #{bert_classifies_forward.7} parent=1 // pred_region
      _
    $region17: #{bert_classifies_forward.7} parent=1 // pred_fallthru
      _
    // Predicated region
    $region18: #{bert_classifies_forward.7} parent=1 // pred_check
      _
    $region19: #{bert_classifies_forward.7} parent=1 // pred_check_branch
      %20 = sbr.rel (0) target = $region21
    $region20: #{bert_classifies_forward.7} parent=1 // pred_region
      _
    $region21: #{bert_classifies_forward.7} parent=1 // pred_fallthru
      _
    %v22 = vld [vmem:[%s0] sm:$0x3]
    %v23 = vpack.c.bf16 %v22, %v22
    %v24 = vld [vmem:[%s1] sm:$0xf]
    %v25 = vld [vmem:[%s1 + $0x4] sm:$0xf]
    %v26 = vld [vmem:[%s1 + $0x8] sm:$0xf]
    %v27 = vld [vmem:[%s1 + $0xc] sm:$0xf]
    %v28 = vld [vmem:[%s2] sm:$0x1]
    %v30 = vlaneseq
    %v31 = vshrl.u32 %v30, 7
    %v32 = vsub.s32 0, %v31
    %v33 = vrot.slane %v28, %v32
    %v39 = vunpack.c.l.b16 %v24
    %v40 = vunpack.c.l.b16 %v25
    %v41 = vunpack.c.l.b16 %v26
    %v42 = vunpack.c.l.b16 %v27
    %v43 = vpack.c.b16 %v40, %v39
    %v44 = vpack.c.b16 %v42, %v41
    %vm47 = vcmask 261120
    %v49 = vsel %vm47, %v23, 0
    %51 = vmatprep.subr.bf16.mxu0 0
    %52 = vmatpush1.bf16.msra.mxu0 %v43
    %53 = vmatprep.subr.bf16.mxu0 0
    %54 = vmatpush1.bf16.msra.mxu0 %v44
    %55 = vmatprep.subr.bf16.mxu0 0
    %56 = vmatpush1.bf16.msra.mxu0 0
    %57 = vmatprep.subr.bf16.mxu0 0
    %58 = vmatpush1.bf16.msra.mxu0 0
    %59 = vmatprep.subr.bf16.mxu0 0
    %60 = vmatpush1.bf16.msra.mxu0 0
    %61 = vmatprep.subr.bf16.mxu0 0
    %62 = vmatpush1.bf16.msra.mxu0 0
    %63 = vmatprep.subr.bf16.mxu0 0
    %64 = vmatpush1.bf16.msra.mxu0 0
    %65 = vmatprep.subr.bf16.mxu0 0
    %66 = vmatpush1.bf16.msra.mxu0 0
    %67 = vmatprep.subr.bf16.mxu0 0
    %68 = vmatpush1.bf16.msra.mxu0 0
    %69 = vmatprep.subr.bf16.mxu0 0
    %70 = vmatpush1.bf16.msra.mxu0 0
    %71 = vmatprep.subr.bf16.mxu0 0
    %72 = vmatpush1.bf16.msra.mxu0 0
    %73 = vmatprep.subr.bf16.mxu0 0
    %74 = vmatpush1.bf16.msra.mxu0 0
    %75 = vmatprep.subr.bf16.mxu0 0
    %76 = vmatpush1.bf16.msra.mxu0 0
    %77 = vmatprep.subr.bf16.mxu0 0
    %78 = vmatpush1.bf16.msra.mxu0 0
    %79 = vmatprep.subr.bf16.mxu0 0
    %80 = vmatpush1.bf16.msra.mxu0 0
    %81 = vmatprep.subr.bf16.mxu0 0
    %82 = vmatpush1.bf16.msra.mxu0 0
    %83 = vmatprep.mubr.bf16.mxu0 0
    %84 = vmatmul.mubr.bf16.gmra.mrb[0].mxu0 %v49
    %v85 = vpop.f32.mrb[0].mxu0
    %v86 = vadd.f32 %v33, %v85
    %v87 = vpop.f32.mrb[0].mxu0
    %v88 = vpop.f32.mrb[0].mxu0
    %v89 = vpop.f32.mrb[0].mxu0
    %90 = vdwg.mxu0
    %v91 = vtanh.pop %v86
    %v92 = vpack.c.bf16 %v91, %v91
    %v93 = vld [vmem:[%s3] sm:$0xf]
    %v94 = vld [vmem:[%s3 + $0x4] sm:$0xf]
    %v95 = vld [vmem:[%s3 + $0x8] sm:$0xf]
    %v96 = vld [vmem:[%s3 + $0xc] sm:$0xf]
    %v97 = vld [vmem:[%s4] sm:$0x1]
    %v99 = vlaneseq
    %v100 = vshrl.u32 %v99, 7
    %v101 = vsub.s32 0, %v100
    %v102 = vrot.slane %v97, %v101
    %v108 = vunpack.c.l.b16 %v93
    %v109 = vunpack.c.l.b16 %v94
    %v110 = vunpack.c.l.b16 %v95
    %v111 = vunpack.c.l.b16 %v96
    %v112 = vpack.c.b16 %v109, %v108
    %v113 = vpack.c.b16 %v111, %v110
    %v117 = vsel %vm47, %v92, 0
    %119 = vmatprep.subr.bf16.mxu0 0
    %120 = vmatpush1.bf16.msra.mxu0 %v112
    %121 = vmatprep.subr.bf16.mxu0 0
    %122 = vmatpush1.bf16.msra.mxu0 %v113
    %123 = vmatprep.subr.bf16.mxu0 0
    %124 = vmatpush1.bf16.msra.mxu0 0
    %125 = vmatprep.subr.bf16.mxu0 0
    %126 = vmatpush1.bf16.msra.mxu0 0
    %127 = vmatprep.subr.bf16.mxu0 0
    %128 = vmatpush1.bf16.msra.mxu0 0
    %129 = vmatprep.subr.bf16.mxu0 0
    %130 = vmatpush1.bf16.msra.mxu0 0
    %131 = vmatprep.subr.bf16.mxu0 0
    %132 = vmatpush1.bf16.msra.mxu0 0
    %133 = vmatprep.subr.bf16.mxu0 0
    %134 = vmatpush1.bf16.msra.mxu0 0
    %135 = vmatprep.subr.bf16.mxu0 0
    %136 = vmatpush1.bf16.msra.mxu0 0
    %137 = vmatprep.subr.bf16.mxu0 0
    %138 = vmatpush1.bf16.msra.mxu0 0
    %139 = vmatprep.subr.bf16.mxu0 0
    %140 = vmatpush1.bf16.msra.mxu0 0
    %141 = vmatprep.subr.bf16.mxu0 0
    %142 = vmatpush1.bf16.msra.mxu0 0
    %143 = vmatprep.subr.bf16.mxu0 0
    %144 = vmatpush1.bf16.msra.mxu0 0
    %145 = vmatprep.subr.bf16.mxu0 0
    %146 = vmatpush1.bf16.msra.mxu0 0
    %147 = vmatprep.subr.bf16.mxu0 0
    %148 = vmatpush1.bf16.msra.mxu0 0
    %149 = vmatprep.subr.bf16.mxu0 0
    %150 = vmatpush1.bf16.msra.mxu0 0
    %151 = vmatprep.mubr.bf16.mxu0 0
    %152 = vmatmul.mubr.bf16.gmra.mrb[0].mxu0 %v117
    %v153 = vpop.f32.mrb[0].mxu0
    %v154 = vadd.f32 %v102, %v153
    %v155 = vpop.f32.mrb[0].mxu0
    %v156 = vpop.f32.mrb[0].mxu0
    %v157 = vpop.f32.mrb[0].mxu0
    %158 = vdwg.mxu0
    %vm159 = vcmask 17408
    %160 = vst.msk [vmem:[#allocation2] sm:$0x3] %vm159, %v154
    // Predicated region
    $region22: #{bert_classifies_forward.7} parent=1 // pred_check
      _
    $region23: #{bert_classifies_forward.7} parent=1 // pred_check_branch
      %162 = sbr.rel (0) target = $region25
    $region24: #{bert_classifies_forward.7} parent=1 // pred_region
      %s164 = ssub.s32 32, 32
      %165 = vsyncadd [#allocation3], %s164
      %s167 = sshll.u32 [#allocation2], 4
      %s168 = int_to_ptr.vmem [resolvable:$true] %s167
      %170 = dma.vmem_to_hbm [thread:$0]  %s168, 32, %s5, [#allocation3]
    $region25: #{bert_classifies_forward.7} parent=1 // pred_fallthru
      _
    // Predicated region
    $region26: #{bert_classifies_forward.7} parent=1 // pred_check
      _
    $region27: #{bert_classifies_forward.7} parent=1 // pred_check_branch
      %172 = sbr.rel (0) target = $region29
    $region28: #{bert_classifies_forward.7} parent=1 // pred_region
      %173 = dma.done [#allocation3], 32
    $region29: #{bert_classifies_forward.7} parent=1 // pred_fallthru
      _
    %174 = vsyncpa [#allocation3], 1

// kernel: bert_classifies_forward.5
$region0: #{bert_classifies_forward.5}
  #allocation0 [shape = 'u32[]', space=smem, size = 0x4, offset = 0x4, fixed_abs, tag = 'smem constant byte address 0x4 - core index']
  #allocation1 [shape = 'u32[144,128]{1,0:T(1,128)}', space=vmem, size = 0x12000, scoped, tag = 'internal scratch']
  %s0 = inlined_call_operand.vmem [shape: f32[2,1,8], index: 0, kind: input, shape index: {}]
  %s1 = inlined_call_operand.vmem [shape: f32[16,32], index: 1, kind: input, shape index: {}]
  %s2 = inlined_call_operand.vmem [shape: bf16[32,96], index: 2, kind: input, shape index: {}]
  %s3 = inlined_call_operand.vmem [shape: f32[1,96], index: 3, kind: input, shape index: {}]
  %s4 = inlined_call_operand.vmem [shape: bf16[32,32], index: 4, kind: input, shape index: {}]
  %s5 = inlined_call_operand.vmem [shape: f32[1,32], index: 5, kind: input, shape index: {}]
  %s6 = inlined_call_operand.vmem [shape: f32[1,32], index: 6, kind: input, shape index: {}]
  %s7 = inlined_call_operand.vmem [shape: f32[1,32], index: 7, kind: input, shape index: {}]
  %s8 = inlined_call_operand.vmem [shape: bf16[32,64], index: 8, kind: input, shape index: {}]
  %s9 = inlined_call_operand.vmem [shape: f32[1,64], index: 9, kind: input, shape index: {}]
  %s10 = inlined_call_operand.vmem [shape: bf16[64,32], index: 10, kind: input, shape index: {}]
  %s11 = inlined_call_operand.vmem [shape: f32[1,32], index: 11, kind: input, shape index: {}]
  %s12 = inlined_call_operand.vmem [shape: f32[1,32], index: 12, kind: input, shape index: {}]
  %s13 = inlined_call_operand.vmem [shape: f32[1,32], index: 13, kind: input, shape index: {}]
  %s14 = inlined_call_operand.vmem [shape: f32[16,32], index: 14, kind: output, shape index: {}]
  %s15 = sld [smem:[#allocation0]]
  $region66: #{bert_classifies_forward.5} parent=0
    _
  %s17 = ssub.s32 1, %s15
  %s18 = scalar_select 0, %s17, %s15
  // Predicated region
  $region2: #{bert_classifies_forward.5} parent=0 // pred_check
    _
  $region3: #{bert_classifies_forward.5} parent=0 // pred_check_branch
    %20 = sbr.rel (0) target = $region5
  $region4: #{bert_classifies_forward.5} parent=0 // pred_region
    _
  $region5: #{bert_classifies_forward.5} parent=0 // pred_fallthru
    _
  // Predicated region
  $region6: #{bert_classifies_forward.5} parent=0 // pred_check
    _
  $region7: #{bert_classifies_forward.5} parent=0 // pred_check_branch
    %22 = sbr.rel (0) target = $region9
  $region8: #{bert_classifies_forward.5} parent=0 // pred_region
    _
  $region9: #{bert_classifies_forward.5} parent=0 // pred_fallthru
    _
  // Predicated region
  $region10: #{bert_classifies_forward.5} parent=0 // pred_check
    _
  $region11: #{bert_classifies_forward.5} parent=0 // pred_check_branch
    %24 = sbr.rel (0) target = $region13
  $region12: #{bert_classifies_forward.5} parent=0 // pred_region
    _
  $region13: #{bert_classifies_forward.5} parent=0 // pred_fallthru
    _
  // Predicated region
  $region14: #{bert_classifies_forward.5} parent=0 // pred_check
    _
  $region15: #{bert_classifies_forward.5} parent=0 // pred_check_branch
    %26 = sbr.rel (0) target = $region17
  $region16: #{bert_classifies_forward.5} parent=0 // pred_region
    _
  $region17: #{bert_classifies_forward.5} parent=0 // pred_fallthru
    _
  // Predicated region
  $region18: #{bert_classifies_forward.5} parent=0 // pred_check
    _
  $region19: #{bert_classifies_forward.5} parent=0 // pred_check_branch
    %28 = sbr.rel (0) target = $region21
  $region20: #{bert_classifies_forward.5} parent=0 // pred_region
    _
  $region21: #{bert_classifies_forward.5} parent=0 // pred_fallthru
    _
  // Predicated region
  $region22: #{bert_classifies_forward.5} parent=0 // pred_check
    _
  $region23: #{bert_classifies_forward.5} parent=0 // pred_check_branch
    %30 = sbr.rel (0) target = $region25
  $region24: #{bert_classifies_forward.5} parent=0 // pred_region
    _
  $region25: #{bert_classifies_forward.5} parent=0 // pred_fallthru
    _
  // Predicated region
  $region26: #{bert_classifies_forward.5} parent=0 // pred_check
    _
  $region27: #{bert_classifies_forward.5} parent=0 // pred_check_branch
    %32 = sbr.rel (0) target = $region29
  $region28: #{bert_classifies_forward.5} parent=0 // pred_region
    _
  $region29: #{bert_classifies_forward.5} parent=0 // pred_fallthru
    _
  // Predicated region
  $region30: #{bert_classifies_forward.5} parent=0 // pred_check
    _
  $region31: #{bert_classifies_forward.5} parent=0 // pred_check_branch
    %34 = sbr.rel (0) target = $region33
  $region32: #{bert_classifies_forward.5} parent=0 // pred_region
    _
  $region33: #{bert_classifies_forward.5} parent=0 // pred_fallthru
    _
  // Predicated region
  $region34: #{bert_classifies_forward.5} parent=0 // pred_check
    _
  $region35: #{bert_classifies_forward.5} parent=0 // pred_check_branch
    %36 = sbr.rel (0) target = $region37
  $region36: #{bert_classifies_forward.5} parent=0 // pred_region
    _
  $region37: #{bert_classifies_forward.5} parent=0 // pred_fallthru
    _
  // Predicated region
  $region38: #{bert_classifies_forward.5} parent=0 // pred_check
    _
  $region39: #{bert_classifies_forward.5} parent=0 // pred_check_branch
    %38 = sbr.rel (0) target = $region41
  $region40: #{bert_classifies_forward.5} parent=0 // pred_region
    _
  $region41: #{bert_classifies_forward.5} parent=0 // pred_fallthru
    _
  // Predicated region
  $region42: #{bert_classifies_forward.5} parent=0 // pred_check
    _
  $region43: #{bert_classifies_forward.5} parent=0 // pred_check_branch
    %40 = sbr.rel (0) target = $region45
  $region44: #{bert_classifies_forward.5} parent=0 // pred_region
    _
  $region45: #{bert_classifies_forward.5} parent=0 // pred_fallthru
    _
  // Predicated region
  $region46: #{bert_classifies_forward.5} parent=0 // pred_check
    _
  $region47: #{bert_classifies_forward.5} parent=0 // pred_check_branch
    %42 = sbr.rel (0) target = $region49
  $region48: #{bert_classifies_forward.5} parent=0 // pred_region
    _
  $region49: #{bert_classifies_forward.5} parent=0 // pred_fallthru
    _
  // Predicated region
  $region50: #{bert_classifies_forward.5} parent=0 // pred_check
    _
  $region51: #{bert_classifies_forward.5} parent=0 // pred_check_branch
    %44 = sbr.rel (0) target = $region53
  $region52: #{bert_classifies_forward.5} parent=0 // pred_region
    _
  $region53: #{bert_classifies_forward.5} parent=0 // pred_fallthru
    _
  // Predicated region
  $region54: #{bert_classifies_forward.5} parent=0 // pred_check
    _
  $region55: #{bert_classifies_forward.5} parent=0 // pred_check_branch
    %46 = sbr.rel (0) target = $region57
  $region56: #{bert_classifies_forward.5} parent=0 // pred_region
    _
  $region57: #{bert_classifies_forward.5} parent=0 // pred_fallthru
    _
  %v48 = vld [vmem:[%s1] sm:$0xff]
  %v49 = vld [vmem:[%s1 + $0x8] sm:$0xff]
  %v50 = vld [vmem:[%s0] sm:$0x1]
  %v51 = vld [vmem:[%s0 + $0x1] sm:$0x1]
  %v52 = vpack.c.bf16 %v49, %v48
  %v53 = vld [vmem:[%s2] sm:$0xf]
  %v54 = vld [vmem:[%s2 + $0x4] sm:$0xf]
  %v55 = vld [vmem:[%s2 + $0x8] sm:$0xf]
  %v56 = vld [vmem:[%s2 + $0xc] sm:$0xf]
  %v57 = vld [vmem:[%s3] sm:$0x1]
  %v59 = vlaneseq
  %v60 = vshrl.u32 %v59, 7
  %v61 = vsub.s32 0, %v60
  %v62 = vrot.slane %v57, %v61
  %v68 = vunpack.c.l.b16 %v53
  %v69 = vunpack.c.l.b16 %v54
  %v70 = vunpack.c.l.b16 %v55
  %v71 = vunpack.c.l.b16 %v56
  %v72 = vpack.c.b16 %v69, %v68
  %v73 = vpack.c.b16 %v71, %v70
  %vm76 = vcmask 261120
  %v78 = vsel %vm76, %v52, 0
  %80 = vmatprep.subr.bf16.mxu0 0
  %81 = vmatpush1.bf16.msra.mxu0 %v72
  %82 = vmatprep.subr.bf16.mxu0 0
  %83 = vmatpush1.bf16.msra.mxu0 %v73
  %84 = vmatprep.subr.bf16.mxu0 0
  %85 = vmatpush1.bf16.msra.mxu0 0
  %86 = vmatprep.subr.bf16.mxu0 0
  %87 = vmatpush1.bf16.msra.mxu0 0
  %88 = vmatprep.subr.bf16.mxu0 0
  %89 = vmatpush1.bf16.msra.mxu0 0
  %90 = vmatprep.subr.bf16.mxu0 0
  %91 = vmatpush1.bf16.msra.mxu0 0
  %92 = vmatprep.subr.bf16.mxu0 0
  %93 = vmatpush1.bf16.msra.mxu0 0
  %94 = vmatprep.subr.bf16.mxu0 0
  %95 = vmatpush1.bf16.msra.mxu0 0
  %96 = vmatprep.subr.bf16.mxu0 0
  %97 = vmatpush1.bf16.msra.mxu0 0
  %98 = vmatprep.subr.bf16.mxu0 0
  %99 = vmatpush1.bf16.msra.mxu0 0
  %100 = vmatprep.subr.bf16.mxu0 0
  %101 = vmatpush1.bf16.msra.mxu0 0
  %102 = vmatprep.subr.bf16.mxu0 0
  %103 = vmatpush1.bf16.msra.mxu0 0
  %104 = vmatprep.subr.bf16.mxu0 0
  %105 = vmatpush1.bf16.msra.mxu0 0
  %106 = vmatprep.subr.bf16.mxu0 0
  %107 = vmatpush1.bf16.msra.mxu0 0
  %108 = vmatprep.subr.bf16.mxu0 0
  %109 = vmatpush1.bf16.msra.mxu0 0
  %110 = vmatprep.subr.bf16.mxu0 0
  %111 = vmatpush1.bf16.msra.mxu0 0
  %112 = vmatprep.mubr.bf16.mxu0 0
  %113 = vmatmul.mubr.bf16.gmra.mrb[0].mxu0 %v78
  %v114 = vpop.f32.mrb[0].mxu0
  %v115 = vadd.f32 %v62, %v114
  %v116 = vpop.f32.mrb[0].mxu0
  %v117 = vpop.f32.mrb[0].mxu0
  %v118 = vadd.f32 %v62, %v117
  %v119 = vpop.f32.mrb[0].mxu0
  %120 = vdwg.mxu0
  %v121 = vld [vmem:[%s4] sm:$0xf]
  %v122 = vld [vmem:[%s4 + $0x4] sm:$0xf]
  %v123 = vld [vmem:[%s4 + $0x8] sm:$0xf]
  %v124 = vld [vmem:[%s4 + $0xc] sm:$0xf]
  %v125 = vld [vmem:[%s5] sm:$0x1]
  %v126 = vpack.c.bf16 %v115, %v115
  %v127 = vpack.c.bf16 %v118, %v118
  %129 = vrot.lane.b32.xlu0 %v126, 96
  %v130 = vpop.permute.xlu0 %129
  %vm131 = vcmask 130048
  %v133 = vsel %vm131, %v126, 0
  %v136 = vsel %vm131, %v130, 0
  %138 = vmatprep.subr.bf16.mxu0 0
  %139 = vmatpush1.bf16.xpose.msra.mxu0 %v136
  %140 = vmatprep.subr.bf16.mxu0 0
  %141 = vmatpush1.bf16.xpose.msra.mxu0 0
  %142 = vmatprep.subr.bf16.mxu0 0
  %143 = vmatpush1.bf16.xpose.msra.mxu0 0
  %144 = vmatprep.subr.bf16.mxu0 0
  %145 = vmatpush1.bf16.xpose.msra.mxu0 0
  %146 = vmatprep.subr.bf16.mxu0 0
  %147 = vmatpush1.bf16.xpose.msra.mxu0 0
  %148 = vmatprep.subr.bf16.mxu0 0
  %149 = vmatpush1.bf16.xpose.msra.mxu0 0
  %150 = vmatprep.subr.bf16.mxu0 0
  %151 = vmatpush1.bf16.xpose.msra.mxu0 0
  %152 = vmatprep.subr.bf16.mxu0 0
  %153 = vmatpush1.bf16.xpose.msra.mxu0 0
  %154 = vmatprep.subr.bf16.mxu0 0
  %155 = vmatpush1.bf16.xpose.msra.mxu0 0
  %156 = vmatprep.subr.bf16.mxu0 0
  %157 = vmatpush1.bf16.xpose.msra.mxu0 0
  %158 = vmatprep.subr.bf16.mxu0 0
  %159 = vmatpush1.bf16.xpose.msra.mxu0 0
  %160 = vmatprep.subr.bf16.mxu0 0
  %161 = vmatpush1.bf16.xpose.msra.mxu0 0
  %162 = vmatprep.subr.bf16.mxu0 0
  %163 = vmatpush1.bf16.xpose.msra.mxu0 0
  %164 = vmatprep.subr.bf16.mxu0 0
  %165 = vmatpush1.bf16.xpose.msra.mxu0 0
  %166 = vmatprep.subr.bf16.mxu0 0
  %167 = vmatpush1.bf16.xpose.msra.mxu0 0
  %168 = vmatprep.subr.bf16.mxu0 0
  %169 = vmatpush1.bf16.xpose.msra.mxu0 0
  %170 = vmatprep.mubr.bf16.mxu0 0
  %171 = vmatmul.mubr.bf16.gmra.mrb[0].mxu0 %v133
  %v172 = vpop.f32.mrb[0].mxu0
  %v173 = vadd.f32 0.0, %v172
  %v174 = vpop.f32.mrb[0].mxu0
  %v175 = vpop.f32.mrb[0].mxu0
  %v176 = vpop.f32.mrb[0].mxu0
  %177 = vdwg.mxu0
  %179 = vrot.lane.b32.xlu0 %v127, 96
  %v180 = vpop.permute.xlu0 %179
  %v182 = vsel %vm131, %v127, 0
  %v185 = vsel %vm131, %v180, 0
  %187 = vmatprep.subr.bf16.mxu0 0
  %188 = vmatpush1.bf16.xpose.msra.mxu0 %v185
  %189 = vmatprep.subr.bf16.mxu0 0
  %190 = vmatpush1.bf16.xpose.msra.mxu0 0
  %191 = vmatprep.subr.bf16.mxu0 0
  %192 = vmatpush1.bf16.xpose.msra.mxu0 0
  %193 = vmatprep.subr.bf16.mxu0 0
  %194 = vmatpush1.bf16.xpose.msra.mxu0 0
  %195 = vmatprep.subr.bf16.mxu0 0
  %196 = vmatpush1.bf16.xpose.msra.mxu0 0
  %197 = vmatprep.subr.bf16.mxu0 0
  %198 = vmatpush1.bf16.xpose.msra.mxu0 0
  %199 = vmatprep.subr.bf16.mxu0 0
  %200 = vmatpush1.bf16.xpose.msra.mxu0 0
  %201 = vmatprep.subr.bf16.mxu0 0
  %202 = vmatpush1.bf16.xpose.msra.mxu0 0
  %203 = vmatprep.subr.bf16.mxu0 0
  %204 = vmatpush1.bf16.xpose.msra.mxu0 0
  %205 = vmatprep.subr.bf16.mxu0 0
  %206 = vmatpush1.bf16.xpose.msra.mxu0 0
  %207 = vmatprep.subr.bf16.mxu0 0
  %208 = vmatpush1.bf16.xpose.msra.mxu0 0
  %209 = vmatprep.subr.bf16.mxu0 0
  %210 = vmatpush1.bf16.xpose.msra.mxu0 0
  %211 = vmatprep.subr.bf16.mxu0 0
  %212 = vmatpush1.bf16.xpose.msra.mxu0 0
  %213 = vmatprep.subr.bf16.mxu0 0
  %214 = vmatpush1.bf16.xpose.msra.mxu0 0
  %215 = vmatprep.subr.bf16.mxu0 0
  %216 = vmatpush1.bf16.xpose.msra.mxu0 0
  %217 = vmatprep.subr.bf16.mxu0 0
  %218 = vmatpush1.bf16.xpose.msra.mxu0 0
  %219 = vmatprep.mubr.bf16.mxu0 0
  %220 = vmatmul.mubr.bf16.gmra.mrb[0].mxu0 %v182
  %v221 = vpop.f32.mrb[0].mxu0
  %v222 = vadd.f32 0.0, %v221
  %v223 = vpop.f32.mrb[0].mxu0
  %v224 = vpop.f32.mrb[0].mxu0
  %v225 = vpop.f32.mrb[0].mxu0
  %226 = vdwg.mxu0
  %v227 = vmul.f32 %v173, 0.25
  %v228 = vmul.f32 %v222, 0.25
  %v231 = vlaneseq
  %v232 = vshrl.u32 %v231, 7
  %v233 = vsub.s32 0, %v232
  %v234 = vrot.slane %v50, %v233
  %v235 = vlaneseq
  %v236 = vshrl.u32 %v235, 7
  %v237 = vsub.s32 0, %v236
  %v238 = vrot.slane %v51, %v237
  %v241 = vadd.f32 %v227, %v234
  %v242 = vadd.f32 %v228, %v238
  %vm243 = vcmask 64512
  %v244 = vsel %vm243, %v241, -inf
  %245 = vmax.xlane.f32.xlu0 %v244
  %v246 = vpop.xlane.xlu0 %245
  %v247 = vsel %vm243, %v242, -inf
  %248 = vmax.xlane.f32.xlu0 %v247
  %v249 = vpop.xlane.xlu0 %248
  %v250 = vsub.f32 %v241, %v246
  %v251 = vsub.f32 %v242, %v249
  %v252 = vmul.f32 %v250, 1.442695
  %v253 = vpow.pop %v252
  %v254 = vmul.f32 %v251, 1.442695
  %v255 = vpow.pop %v254
  %v256 = vsel %vm243, %v253, 0.0
  %257 = vadd.xlane.f32.xlu0 %v256
  %v258 = vpop.xlane.xlu0 %257
  %v259 = vsel %vm243, %v255, 0.0
  %260 = vadd.xlane.f32.xlu0 %v259
  %v261 = vpop.xlane.xlu0 %260
  %v262 = vrcp.pop %v258
  %v263 = vrcp.pop %v261
  %v264 = vmul.f32 %v253, %v262
  %v265 = vmul.f32 %v255, %v263
  %v266 = vpack.c.bf16 %v264, %v264
  %v267 = vpack.c.bf16 %v265, %v265
  %268 = vrot.lane.b32.xlu0 %v126, 64
  %v269 = vpop.permute.xlu0 %268
  %v271 = vsel %vm243, %v266, 0
  %vm273 = vcmask 1043456
  %v275 = vsel %vm273, %v269, 0
  %277 = vmatprep.subr.bf16.mxu0 0
  %278 = vmatpush1.bf16.msra.mxu0 %v275
  %279 = vmatprep.subr.bf16.mxu0 0
  %280 = vmatpush1.bf16.msra.mxu0 0
  %281 = vmatprep.subr.bf16.mxu0 0
  %282 = vmatpush1.bf16.msra.mxu0 0
  %283 = vmatprep.subr.bf16.mxu0 0
  %284 = vmatpush1.bf16.msra.mxu0 0
  %285 = vmatprep.subr.bf16.mxu0 0
  %286 = vmatpush1.bf16.msra.mxu0 0
  %287 = vmatprep.subr.bf16.mxu0 0
  %288 = vmatpush1.bf16.msra.mxu0 0
  %289 = vmatprep.subr.bf16.mxu0 0
  %290 = vmatpush1.bf16.msra.mxu0 0
  %291 = vmatprep.subr.bf16.mxu0 0
  %292 = vmatpush1.bf16.msra.mxu0 0
  %293 = vmatprep.subr.bf16.mxu0 0
  %294 = vmatpush1.bf16.msra.mxu0 0
  %295 = vmatprep.subr.bf16.mxu0 0
  %296 = vmatpush1.bf16.msra.mxu0 0
  %297 = vmatprep.subr.bf16.mxu0 0
  %298 = vmatpush1.bf16.msra.mxu0 0
  %299 = vmatprep.subr.bf16.mxu0 0
  %300 = vmatpush1.bf16.msra.mxu0 0
  %301 = vmatprep.subr.bf16.mxu0 0
  %302 = vmatpush1.bf16.msra.mxu0 0
  %303 = vmatprep.subr.bf16.mxu0 0
  %304 = vmatpush1.bf16.msra.mxu0 0
  %305 = vmatprep.subr.bf16.mxu0 0
  %306 = vmatpush1.bf16.msra.mxu0 0
  %307 = vmatprep.subr.bf16.mxu0 0
  %308 = vmatpush1.bf16.msra.mxu0 0
  %309 = vmatprep.mubr.bf16.mxu0 0
  %310 = vmatmul.mubr.bf16.gmra.mrb[0].mxu0 %v271
  %v311 = vpop.f32.mrb[0].mxu0
  %v312 = vadd.f32 0.0, %v311
  %v313 = vpop.f32.mrb[0].mxu0
  %v314 = vpop.f32.mrb[0].mxu0
  %v315 = vpop.f32.mrb[0].mxu0
  %316 = vdwg.mxu0
  %317 = vrot.lane.b32.xlu0 %v127, 64
  %v318 = vpop.permute.xlu0 %317
  %v320 = vsel %vm243, %v267, 0
  %v323 = vsel %vm273, %v318, 0
  %325 = vmatprep.subr.bf16.mxu0 0
  %326 = vmatpush1.bf16.msra.mxu0 %v323
  %327 = vmatprep.subr.bf16.mxu0 0
  %328 = vmatpush1.bf16.msra.mxu0 0
  %329 = vmatprep.subr.bf16.mxu0 0
  %330 = vmatpush1.bf16.msra.mxu0 0
  %331 = vmatprep.subr.bf16.mxu0 0
  %332 = vmatpush1.bf16.msra.mxu0 0
  %333 = vmatprep.subr.bf16.mxu0 0
  %334 = vmatpush1.bf16.msra.mxu0 0
  %335 = vmatprep.subr.bf16.mxu0 0
  %336 = vmatpush1.bf16.msra.mxu0 0
  %337 = vmatprep.subr.bf16.mxu0 0
  %338 = vmatpush1.bf16.msra.mxu0 0
  %339 = vmatprep.subr.bf16.mxu0 0
  %340 = vmatpush1.bf16.msra.mxu0 0
  %341 = vmatprep.subr.bf16.mxu0 0
  %342 = vmatpush1.bf16.msra.mxu0 0
  %343 = vmatprep.subr.bf16.mxu0 0
  %344 = vmatpush1.bf16.msra.mxu0 0
  %345 = vmatprep.subr.bf16.mxu0 0
  %346 = vmatpush1.bf16.msra.mxu0 0
  %347 = vmatprep.subr.bf16.mxu0 0
  %348 = vmatpush1.bf16.msra.mxu0 0
  %349 = vmatprep.subr.bf16.mxu0 0
  %350 = vmatpush1.bf16.msra.mxu0 0
  %351 = vmatprep.subr.bf16.mxu0 0
  %352 = vmatpush1.bf16.msra.mxu0 0
  %353 = vmatprep.subr.bf16.mxu0 0
  %354 = vmatpush1.bf16.msra.mxu0 0
  %355 = vmatprep.subr.bf16.mxu0 0
  %356 = vmatpush1.bf16.msra.mxu0 0
  %357 = vmatprep.mubr.bf16.mxu0 0
  %358 = vmatmul.mubr.bf16.gmra.mrb[0].mxu0 %v320
  %v359 = vpop.f32.mrb[0].mxu0
  %v360 = vadd.f32 0.0, %v359
  %v361 = vpop.f32.mrb[0].mxu0
  %v362 = vpop.f32.mrb[0].mxu0
  %v363 = vpop.f32.mrb[0].mxu0
  %364 = vdwg.mxu0
  %v365 = vpack.c.bf16 %v360, %v312
  %v368 = vunpack.c.l.b16 %v121
  %v369 = vunpack.c.l.b16 %v122
  %v370 = vpack.c.b16 %v369, %v368
  %v373 = vsel %vm131, %v365, 0
  %375 = vmatprep.subr.bf16.mxu0 0
  %376 = vmatpush1.bf16.msra.mxu0 %v370
  %377 = vmatprep.subr.bf16.mxu0 0
  %378 = vmatpush1.bf16.msra.mxu0 0
  %379 = vmatprep.subr.bf16.mxu0 0
  %380 = vmatpush1.bf16.msra.mxu0 0
  %381 = vmatprep.subr.bf16.mxu0 0
  %382 = vmatpush1.bf16.msra.mxu0 0
  %383 = vmatprep.subr.bf16.mxu0 0
  %384 = vmatpush1.bf16.msra.mxu0 0
  %385 = vmatprep.subr.bf16.mxu0 0
  %386 = vmatpush1.bf16.msra.mxu0 0
  %387 = vmatprep.subr.bf16.mxu0 0
  %388 = vmatpush1.bf16.msra.mxu0 0
  %389 = vmatprep.subr.bf16.mxu0 0
  %390 = vmatpush1.bf16.msra.mxu0 0
  %391 = vmatprep.subr.bf16.mxu0 0
  %392 = vmatpush1.bf16.msra.mxu0 0
  %393 = vmatprep.subr.bf16.mxu0 0
  %394 = vmatpush1.bf16.msra.mxu0 0
  %395 = vmatprep.subr.bf16.mxu0 0
  %396 = vmatpush1.bf16.msra.mxu0 0
  %397 = vmatprep.subr.bf16.mxu0 0
  %398 = vmatpush1.bf16.msra.mxu0 0
  %399 = vmatprep.subr.bf16.mxu0 0
  %400 = vmatpush1.bf16.msra.mxu0 0
  %401 = vmatprep.subr.bf16.mxu0 0
  %402 = vmatpush1.bf16.msra.mxu0 0
  %403 = vmatprep.subr.bf16.mxu0 0
  %404 = vmatpush1.bf16.msra.mxu0 0
  %405 = vmatprep.subr.bf16.mxu0 0
  %406 = vmatpush1.bf16.msra.mxu0 0
  %407 = vmatprep.mubr.bf16.mxu0 0
  %408 = vmatmul.mubr.bf16.gmra.mrb[0].mxu0 %v373
  %v409 = vpop.f32.mrb[0].mxu0
  %v410 = vadd.f32 0.0, %v409
  %v411 = vpop.f32.mrb[0].mxu0
  %v412 = vpop.f32.mrb[0].mxu0
  %v413 = vadd.f32 0.0, %v412
  %v414 = vpop.f32.mrb[0].mxu0
  %415 = vdwg.mxu0
  %v417 = vlaneseq
  %v418 = vshrl.u32 %v417, 7
  %v419 = vsub.s32 0, %v418
  %v420 = vrot.slane %v125, %v419
  %v422 = vadd.f32 %v420, %v410
  %v423 = vadd.f32 %v420, %v413
  %424 = vrot.lane.b32.xlu0 %v126, 112
  %v425 = vpop.permute.xlu0 %424
  %426 = vrot.lane.b32.xlu0 %v126, 80
  %v427 = vpop.permute.xlu0 %426
  %v429 = vsel %vm131, %v425, 0
  %v432 = vsel %vm131, %v427, 0
  %434 = vmatprep.subr.bf16.mxu0 0
  %435 = vmatpush1.bf16.xpose.msra.mxu0 %v432
  %436 = vmatprep.subr.bf16.mxu0 0
  %437 = vmatpush1.bf16.xpose.msra.mxu0 0
  %438 = vmatprep.subr.bf16.mxu0 0
  %439 = vmatpush1.bf16.xpose.msra.mxu0 0
  %440 = vmatprep.subr.bf16.mxu0 0
  %441 = vmatpush1.bf16.xpose.msra.mxu0 0
  %442 = vmatprep.subr.bf16.mxu0 0
  %443 = vmatpush1.bf16.xpose.msra.mxu0 0
  %444 = vmatprep.subr.bf16.mxu0 0
  %445 = vmatpush1.bf16.xpose.msra.mxu0 0
  %446 = vmatprep.subr.bf16.mxu0 0
  %447 = vmatpush1.bf16.xpose.msra.mxu0 0
  %448 = vmatprep.subr.bf16.mxu0 0
  %449 = vmatpush1.bf16.xpose.msra.mxu0 0
  %450 = vmatprep.subr.bf16.mxu0 0
  %451 = vmatpush1.bf16.xpose.msra.mxu0 0
  %452 = vmatprep.subr.bf16.mxu0 0
  %453 = vmatpush1.bf16.xpose.msra.mxu0 0
  %454 = vmatprep.subr.bf16.mxu0 0
  %455 = vmatpush1.bf16.xpose.msra.mxu0 0
  %456 = vmatprep.subr.bf16.mxu0 0
  %457 = vmatpush1.bf16.xpose.msra.mxu0 0
  %458 = vmatprep.subr.bf16.mxu0 0
  %459 = vmatpush1.bf16.xpose.msra.mxu0 0
  %460 = vmatprep.subr.bf16.mxu0 0
  %461 = vmatpush1.bf16.xpose.msra.mxu0 0
  %462 = vmatprep.subr.bf16.mxu0 0
  %463 = vmatpush1.bf16.xpose.msra.mxu0 0
  %464 = vmatprep.subr.bf16.mxu0 0
  %465 = vmatpush1.bf16.xpose.msra.mxu0 0
  %466 = vmatprep.mubr.bf16.mxu0 0
  %467 = vmatmul.mubr.bf16.gmra.mrb[0].mxu0 %v429
  %v468 = vpop.f32.mrb[0].mxu0
  %v469 = vadd.f32 0.0, %v468
  %v470 = vpop.f32.mrb[0].mxu0
  %v471 = vpop.f32.mrb[0].mxu0
  %v472 = vpop.f32.mrb[0].mxu0
  %473 = vdwg.mxu0
  %474 = vrot.lane.b32.xlu0 %v127, 112
  %v475 = vpop.permute.xlu0 %474
  %476 = vrot.lane.b32.xlu0 %v127, 80
  %v477 = vpop.permute.xlu0 %476
  %v479 = vsel %vm131, %v475, 0
  %v482 = vsel %vm131, %v477, 0
  %484 = vmatprep.subr.bf16.mxu0 0
  %485 = vmatpush1.bf16.xpose.msra.mxu0 %v482
  %486 = vmatprep.subr.bf16.mxu0 0
  %487 = vmatpush1.bf16.xpose.msra.mxu0 0
  %488 = vmatprep.subr.bf16.mxu0 0
  %489 = vmatpush1.bf16.xpose.msra.mxu0 0
  %490 = vmatprep.subr.bf16.mxu0 0
  %491 = vmatpush1.bf16.xpose.msra.mxu0 0
  %492 = vmatprep.subr.bf16.mxu0 0
  %493 = vmatpush1.bf16.xpose.msra.mxu0 0
  %494 = vmatprep.subr.bf16.mxu0 0
  %495 = vmatpush1.bf16.xpose.msra.mxu0 0
  %496 = vmatprep.subr.bf16.mxu0 0
  %497 = vmatpush1.bf16.xpose.msra.mxu0 0
  %498 = vmatprep.subr.bf16.mxu0 0
  %499 = vmatpush1.bf16.xpose.msra.mxu0 0
  %500 = vmatprep.subr.bf16.mxu0 0
  %501 = vmatpush1.bf16.xpose.msra.mxu0 0
  %502 = vmatprep.subr.bf16.mxu0 0
  %503 = vmatpush1.bf16.xpose.msra.mxu0 0
  %504 = vmatprep.subr.bf16.mxu0 0
  %505 = vmatpush1.bf16.xpose.msra.mxu0 0
  %506 = vmatprep.subr.bf16.mxu0 0
  %507 = vmatpush1.bf16.xpose.msra.mxu0 0
  %508 = vmatprep.subr.bf16.mxu0 0
  %509 = vmatpush1.bf16.xpose.msra.mxu0 0
  %510 = vmatprep.subr.bf16.mxu0 0
  %511 = vmatpush1.bf16.xpose.msra.mxu0 0
  %512 = vmatprep.subr.bf16.mxu0 0
  %513 = vmatpush1.bf16.xpose.msra.mxu0 0
  %514 = vmatprep.subr.bf16.mxu0 0
  %515 = vmatpush1.bf16.xpose.msra.mxu0 0
  %516 = vmatprep.mubr.bf16.mxu0 0
  %517 = vmatmul.mubr.bf16.gmra.mrb[0].mxu0 %v479
  %v518 = vpop.f32.mrb[0].mxu0
  %v519 = vadd.f32 0.0, %v518
  %v520 = vpop.f32.mrb[0].mxu0
  %v521 = vpop.f32.mrb[0].mxu0
  %v522 = vpop.f32.mrb[0].mxu0
  %523 = vdwg.mxu0
  %v524 = vmul.f32 %v469, 0.25
  %v525 = vmul.f32 %v519, 0.25
  %v526 = vadd.f32 %v524, %v234
  %v527 = vadd.f32 %v525, %v238
  %v528 = vsel %vm243, %v526, -inf
  %529 = vmax.xlane.f32.xlu0 %v528
  %v530 = vpop.xlane.xlu0 %529
  %v531 = vsel %vm243, %v527, -inf
  %532 = vmax.xlane.f32.xlu0 %v531
  %v533 = vpop.xlane.xlu0 %532
  %v534 = vsub.f32 %v526, %v530
  %v535 = vsub.f32 %v527, %v533
  %v536 = vmul.f32 %v534, 1.442695
  %v537 = vpow.pop %v536
  %v538 = vmul.f32 %v535, 1.442695
  %v539 = vpow.pop %v538
  %v540 = vsel %vm243, %v537, 0.0
  %541 = vadd.xlane.f32.xlu0 %v540
  %v542 = vpop.xlane.xlu0 %541
  %v543 = vsel %vm243, %v539, 0.0
  %544 = vadd.xlane.f32.xlu0 %v543
  %v545 = vpop.xlane.xlu0 %544
  %v546 = vrcp.pop %v542
  %v547 = vrcp.pop %v545
  %v548 = vmul.f32 %v537, %v546
  %v549 = vmul.f32 %v539, %v547
  %v550 = vpack.c.bf16 %v548, %v548
  %v551 = vpack.c.bf16 %v549, %v549
  %552 = vrot.lane.b32.xlu0 %v126, 48
  %v553 = vpop.permute.xlu0 %552
  %v555 = vsel %vm243, %v550, 0
  %v558 = vsel %vm273, %v553, 0
  %560 = vmatprep.subr.bf16.mxu0 0
  %561 = vmatpush1.bf16.msra.mxu0 %v558
  %562 = vmatprep.subr.bf16.mxu0 0
  %563 = vmatpush1.bf16.msra.mxu0 0
  %564 = vmatprep.subr.bf16.mxu0 0
  %565 = vmatpush1.bf16.msra.mxu0 0
  %566 = vmatprep.subr.bf16.mxu0 0
  %567 = vmatpush1.bf16.msra.mxu0 0
  %568 = vmatprep.subr.bf16.mxu0 0
  %569 = vmatpush1.bf16.msra.mxu0 0
  %570 = vmatprep.subr.bf16.mxu0 0
  %571 = vmatpush1.bf16.msra.mxu0 0
  %572 = vmatprep.subr.bf16.mxu0 0
  %573 = vmatpush1.bf16.msra.mxu0 0
  %574 = vmatprep.subr.bf16.mxu0 0
  %575 = vmatpush1.bf16.msra.mxu0 0
  %576 = vmatprep.subr.bf16.mxu0 0
  %577 = vmatpush1.bf16.msra.mxu0 0
  %578 = vmatprep.subr.bf16.mxu0 0
  %579 = vmatpush1.bf16.msra.mxu0 0
  %580 = vmatprep.subr.bf16.mxu0 0
  %581 = vmatpush1.bf16.msra.mxu0 0
  %582 = vmatprep.subr.bf16.mxu0 0
  %583 = vmatpush1.bf16.msra.mxu0 0
  %584 = vmatprep.subr.bf16.mxu0 0
  %585 = vmatpush1.bf16.msra.mxu0 0
  %586 = vmatprep.subr.bf16.mxu0 0
  %587 = vmatpush1.bf16.msra.mxu0 0
  %588 = vmatprep.subr.bf16.mxu0 0
  %589 = vmatpush1.bf16.msra.mxu0 0
  %590 = vmatprep.subr.bf16.mxu0 0
  %591 = vmatpush1.bf16.msra.mxu0 0
  %592 = vmatprep.mubr.bf16.mxu0 0
  %593 = vmatmul.mubr.bf16.gmra.mrb[0].mxu0 %v555
  %v594 = vpop.f32.mrb[0].mxu0
  %v595 = vadd.f32 0.0, %v594
  %v596 = vpop.f32.mrb[0].mxu0
  %v597 = vpop.f32.mrb[0].mxu0
  %v598 = vpop.f32.mrb[0].mxu0
  %599 = vdwg.mxu0
  %600 = vrot.lane.b32.xlu0 %v127, 48
  %v601 = vpop.permute.xlu0 %600
  %v603 = vsel %vm243, %v551, 0
  %v606 = vsel %vm273, %v601, 0
  %608 = vmatprep.subr.bf16.mxu0 0
  %609 = vmatpush1.bf16.msra.mxu0 %v606
  %610 = vmatprep.subr.bf16.mxu0 0
  %611 = vmatpush1.bf16.msra.mxu0 0
  %612 = vmatprep.subr.bf16.mxu0 0
  %613 = vmatpush1.bf16.msra.mxu0 0
  %614 = vmatprep.subr.bf16.mxu0 0
  %615 = vmatpush1.bf16.msra.mxu0 0
  %616 = vmatprep.subr.bf16.mxu0 0
  %617 = vmatpush1.bf16.msra.mxu0 0
  %618 = vmatprep.subr.bf16.mxu0 0
  %619 = vmatpush1.bf16.msra.mxu0 0
  %620 = vmatprep.subr.bf16.mxu0 0
  %621 = vmatpush1.bf16.msra.mxu0 0
  %622 = vmatprep.subr.bf16.mxu0 0
  %623 = vmatpush1.bf16.msra.mxu0 0
  %624 = vmatprep.subr.bf16.mxu0 0
  %625 = vmatpush1.bf16.msra.mxu0 0
  %626 = vmatprep.subr.bf16.mxu0 0
  %627 = vmatpush1.bf16.msra.mxu0 0
  %628 = vmatprep.subr.bf16.mxu0 0
  %629 = vmatpush1.bf16.msra.mxu0 0
  %630 = vmatprep.subr.bf16.mxu0 0
  %631 = vmatpush1.bf16.msra.mxu0 0
  %632 = vmatprep.subr.bf16.mxu0 0
  %633 = vmatpush1.bf16.msra.mxu0 0
  %634 = vmatprep.subr.bf16.mxu0 0
  %635 = vmatpush1.bf16.msra.mxu0 0
  %636 = vmatprep.subr.bf16.mxu0 0
  %637 = vmatpush1.bf16.msra.mxu0 0
  %638 = vmatprep.subr.bf16.mxu0 0
  %639 = vmatpush1.bf16.msra.mxu0 0
  %640 = vmatprep.mubr.bf16.mxu0 0
  %641 = vmatmul.mubr.bf16.gmra.mrb[0].mxu0 %v603
  %v642 = vpop.f32.mrb[0].mxu0
  %v643 = vadd.f32 0.0, %v642
  %v644 = vpop.f32.mrb[0].mxu0
  %v645 = vpop.f32.mrb[0].mxu0
  %v646 = vpop.f32.mrb[0].mxu0
  %647 = vdwg.mxu0
  %v648 = vpack.c.bf16 %v643, %v595
  %v651 = vunpack.c.l.b16 %v123
  %v652 = vunpack.c.l.b16 %v124
  %v653 = vpack.c.b16 %v652, %v651
  %v656 = vsel %vm131, %v648, 0
  %658 = vmatprep.subr.bf16.mxu0 0
  %659 = vmatpush1.bf16.msra.mxu0 %v653
  %660 = vmatprep.subr.bf16.mxu0 0
  %661 = vmatpush1.bf16.msra.mxu0 0
  %662 = vmatprep.subr.bf16.mxu0 0
  %663 = vmatpush1.bf16.msra.mxu0 0
  %664 = vmatprep.subr.bf16.mxu0 0
  %665 = vmatpush1.bf16.msra.mxu0 0
  %666 = vmatprep.subr.bf16.mxu0 0
  %667 = vmatpush1.bf16.msra.mxu0 0
  %668 = vmatprep.subr.bf16.mxu0 0
  %669 = vmatpush1.bf16.msra.mxu0 0
  %670 = vmatprep.subr.bf16.mxu0 0
  %671 = vmatpush1.bf16.msra.mxu0 0
  %672 = vmatprep.subr.bf16.mxu0 0
  %673 = vmatpush1.bf16.msra.mxu0 0
  %674 = vmatprep.subr.bf16.mxu0 0
  %675 = vmatpush1.bf16.msra.mxu0 0
  %676 = vmatprep.subr.bf16.mxu0 0
  %677 = vmatpush1.bf16.msra.mxu0 0
  %678 = vmatprep.subr.bf16.mxu0 0
  %679 = vmatpush1.bf16.msra.mxu0 0
  %680 = vmatprep.subr.bf16.mxu0 0
  %681 = vmatpush1.bf16.msra.mxu0 0
  %682 = vmatprep.subr.bf16.mxu0 0
  %683 = vmatpush1.bf16.msra.mxu0 0
  %684 = vmatprep.subr.bf16.mxu0 0
  %685 = vmatpush1.bf16.msra.mxu0 0
  %686 = vmatprep.subr.bf16.mxu0 0
  %687 = vmatpush1.bf16.msra.mxu0 0
  %688 = vmatprep.subr.bf16.mxu0 0
  %689 = vmatpush1.bf16.msra.mxu0 0
  %690 = vmatprep.mubr.bf16.mxu0 0
  %691 = vmatmul.mubr.bf16.gmra.mrb[0].mxu0 %v656
  %v692 = vpop.f32.mrb[0].mxu0
  %v693 = vadd.f32 0.0, %v692
  %v694 = vpop.f32.mrb[0].mxu0
  %v695 = vpop.f32.mrb[0].mxu0
  %v696 = vadd.f32 0.0, %v695
  %v697 = vpop.f32.mrb[0].mxu0
  %698 = vdwg.mxu0
  %v699 = vadd.f32 %v422, %v693
  %v700 = vadd.f32 %v423, %v696
  %v701 = vadd.f32 %v699, %v48
  %v702 = vadd.f32 %v700, %v49
  %v703 = vld [vmem:[%s6] sm:$0x1]
  %v704 = vld [vmem:[%s7] sm:$0x1]
  %v705 = vsel %vm76, %v701, 0.0
  %706 = vadd.xlane.f32.xlu0 %v705
  %v707 = vpop.xlane.xlu0 %706
  %v708 = vsel %vm76, %v702, 0.0
  %709 = vadd.xlane.f32.xlu0 %v708
  %v710 = vpop.xlane.xlu0 %709
  %v711 = vrcp.pop 32.0
  %v712 = vmul.f32 %v707, %v711
  %v713 = vmul.f32 %v710, %v711
  %v714 = vsub.f32 %v701, %v712
  %v715 = vsub.f32 %v702, %v713
  %v716 = vmul.f32 %v714, %v714
  %v717 = vmul.f32 %v715, %v715
  %v718 = vsel %vm76, %v716, 0.0
  %719 = vadd.xlane.f32.xlu0 %v718
  %v720 = vpop.xlane.xlu0 %719
  %v721 = vsel %vm76, %v717, 0.0
  %722 = vadd.xlane.f32.xlu0 %v721
  %v723 = vpop.xlane.xlu0 %722
  %v724 = vmul.f32 %v720, %v711
  %v725 = vmul.f32 %v723, %v711
  %v726 = vadd.f32 %v724, 1e-12
  %v727 = vadd.f32 %v725, 1e-12
  %v728 = vrsqrt.pop %v726
  %v729 = vrsqrt.pop %v727
  %v730 = vmul.f32 %v714, %v728
  %v731 = vmul.f32 %v715, %v729
  %v733 = vlaneseq
  %v734 = vshrl.u32 %v733, 7
  %v735 = vsub.s32 0, %v734
  %v736 = vrot.slane %v703, %v735
  %v738 = vmul.f32 %v730, %v736
  %v739 = vmul.f32 %v731, %v736
  %v741 = vlaneseq
  %v742 = vshrl.u32 %v741, 7
  %v743 = vsub.s32 0, %v742
  %v744 = vrot.slane %v704, %v743
  %v746 = vadd.f32 %v738, %v744
  %v747 = vadd.f32 %v739, %v744
  %v748 = vpack.c.bf16 %v747, %v746
  %v749 = vld [vmem:[%s8] sm:$0xf]
  %v750 = vld [vmem:[%s8 + $0x4] sm:$0xf]
  %v751 = vld [vmem:[%s8 + $0x8] sm:$0xf]
  %v752 = vld [vmem:[%s8 + $0xc] sm:$0xf]
  %v753 = vld [vmem:[%s9] sm:$0x1]
  %v755 = vlaneseq
  %v756 = vshrl.u32 %v755, 7
  %v757 = vsub.s32 0, %v756
  %v758 = vrot.slane %v753, %v757
  %v764 = vunpack.c.l.b16 %v749
  %v765 = vunpack.c.l.b16 %v750
  %v766 = vunpack.c.l.b16 %v751
  %v767 = vunpack.c.l.b16 %v752
  %v768 = vpack.c.b16 %v765, %v764
  %v769 = vpack.c.b16 %v767, %v766
  %v773 = vsel %vm76, %v748, 0
  %775 = vmatprep.subr.bf16.mxu0 0
  %776 = vmatpush1.bf16.msra.mxu0 %v768
  %777 = vmatprep.subr.bf16.mxu0 0
  %778 = vmatpush1.bf16.msra.mxu0 %v769
  %779 = vmatprep.subr.bf16.mxu0 0
  %780 = vmatpush1.bf16.msra.mxu0 0
  %781 = vmatprep.subr.bf16.mxu0 0
  %782 = vmatpush1.bf16.msra.mxu0 0
  %783 = vmatprep.subr.bf16.mxu0 0
  %784 = vmatpush1.bf16.msra.mxu0 0
  %785 = vmatprep.subr.bf16.mxu0 0
  %786 = vmatpush1.bf16.msra.mxu0 0
  %787 = vmatprep.subr.bf16.mxu0 0
  %788 = vmatpush1.bf16.msra.mxu0 0
  %789 = vmatprep.subr.bf16.mxu0 0
  %790 = vmatpush1.bf16.msra.mxu0 0
  %791 = vmatprep.subr.bf16.mxu0 0
  %792 = vmatpush1.bf16.msra.mxu0 0
  %793 = vmatprep.subr.bf16.mxu0 0
  %794 = vmatpush1.bf16.msra.mxu0 0
  %795 = vmatprep.subr.bf16.mxu0 0
  %796 = vmatpush1.bf16.msra.mxu0 0
  %797 = vmatprep.subr.bf16.mxu0 0
  %798 = vmatpush1.bf16.msra.mxu0 0
  %799 = vmatprep.subr.bf16.mxu0 0
  %800 = vmatpush1.bf16.msra.mxu0 0
  %801 = vmatprep.subr.bf16.mxu0 0
  %802 = vmatpush1.bf16.msra.mxu0 0
  %803 = vmatprep.subr.bf16.mxu0 0
  %804 = vmatpush1.bf16.msra.mxu0 0
  %805 = vmatprep.subr.bf16.mxu0 0
  %806 = vmatpush1.bf16.msra.mxu0 0
  %807 = vmatprep.mubr.bf16.mxu0 0
  %808 = vmatmul.mubr.bf16.gmra.mrb[0].mxu0 %v773
  %v809 = vpop.f32.mrb[0].mxu0
  %v810 = vadd.f32 %v758, %v809
  %v811 = vpop.f32.mrb[0].mxu0
  %v812 = vpop.f32.mrb[0].mxu0
  %v813 = vadd.f32 %v758, %v812
  %v814 = vpop.f32.mrb[0].mxu0
  %815 = vdwg.mxu0
  %v816 = vmul.f32 %v810, %v810
  %v817 = vmul.f32 %v813, %v813
  %v818 = vmul.f32 %v810, %v816
  %v819 = vmul.f32 %v813, %v817
  %v820 = vmul.f32 %v818, 0.044715
  %v821 = vmul.f32 %v819, 0.044715
  %v822 = vadd.f32 %v810, %v820
  %v823 = vadd.f32 %v813, %v821
  %v824 = vmul.f32 %v822, 0.7978846
  %v825 = vmul.f32 %v823, 0.7978846
  %v826 = vtanh.pop %v824
  %v827 = vtanh.pop %v825
  %v828 = vadd.f32 %v826, 1.0
  %v829 = vadd.f32 %v827, 1.0
  %v830 = vmul.f32 %v828, 0.5
  %v831 = vmul.f32 %v829, 0.5
  %v832 = vmul.f32 %v810, %v830
  %v833 = vmul.f32 %v813, %v831
  %v834 = vpack.c.bf16 %v833, %v832
  %v835 = vld [vmem:[%s10] sm:$0xf]
  %v836 = vld [vmem:[%s10 + $0x4] sm:$0xf]
  %v837 = vld [vmem:[%s10 + $0x8] sm:$0xf]
  %v838 = vld [vmem:[%s10 + $0xc] sm:$0xf]
  %v839 = vld [vmem:[%s10 + $0x10] sm:$0xf]
  %v840 = vld [vmem:[%s10 + $0x14] sm:$0xf]
  %v841 = vld [vmem:[%s10 + $0x18] sm:$0xf]
  %v842 = vld [vmem:[%s10 + $0x1c] sm:$0xf]
  %v843 = vld [vmem:[%s11] sm:$0x1]
  %v845 = vlaneseq
  %v846 = vshrl.u32 %v845, 7
  %v847 = vsub.s32 0, %v846
  %v848 = vrot.slane %v843, %v847
  %v858 = vunpack.c.l.b16 %v835
  %v859 = vunpack.c.l.b16 %v836
  %v860 = vunpack.c.l.b16 %v837
  %v861 = vunpack.c.l.b16 %v838
  %v862 = vunpack.c.l.b16 %v839
  %v863 = vunpack.c.l.b16 %v840
  %v864 = vunpack.c.l.b16 %v841
  %v865 = vunpack.c.l.b16 %v842
  %v866 = vpack.c.b16 %v859, %v858
  %v867 = vpack.c.b16 %v861, %v860
  %v868 = vpack.c.b16 %v863, %v862
  %v869 = vpack.c.b16 %v865, %v864
  %vm874 = vcmask 523264
  %v876 = vsel %vm874, %v834, 0
  %878 = vmatprep.subr.bf16.mxu0 0
  %879 = vmatpush1.bf16.msra.mxu0 %v866
  %880 = vmatprep.subr.bf16.mxu0 0
  %881 = vmatpush1.bf16.msra.mxu0 %v867
  %882 = vmatprep.subr.bf16.mxu0 0
  %883 = vmatpush1.bf16.msra.mxu0 %v868
  %884 = vmatprep.subr.bf16.mxu0 0
  %885 = vmatpush1.bf16.msra.mxu0 %v869
  %886 = vmatprep.subr.bf16.mxu0 0
  %887 = vmatpush1.bf16.msra.mxu0 0
  %888 = vmatprep.subr.bf16.mxu0 0
  %889 = vmatpush1.bf16.msra.mxu0 0
  %890 = vmatprep.subr.bf16.mxu0 0
  %891 = vmatpush1.bf16.msra.mxu0 0
  %892 = vmatprep.subr.bf16.mxu0 0
  %893 = vmatpush1.bf16.msra.mxu0 0
  %894 = vmatprep.subr.bf16.mxu0 0
  %895 = vmatpush1.bf16.msra.mxu0 0
  %896 = vmatprep.subr.bf16.mxu0 0
  %897 = vmatpush1.bf16.msra.mxu0 0
  %898 = vmatprep.subr.bf16.mxu0 0
  %899 = vmatpush1.bf16.msra.mxu0 0
  %900 = vmatprep.subr.bf16.mxu0 0
  %901 = vmatpush1.bf16.msra.mxu0 0
  %902 = vmatprep.subr.bf16.mxu0 0
  %903 = vmatpush1.bf16.msra.mxu0 0
  %904 = vmatprep.subr.bf16.mxu0 0
  %905 = vmatpush1.bf16.msra.mxu0 0
  %906 = vmatprep.subr.bf16.mxu0 0
  %907 = vmatpush1.bf16.msra.mxu0 0
  %908 = vmatprep.subr.bf16.mxu0 0
  %909 = vmatpush1.bf16.msra.mxu0 0
  %910 = vmatprep.mubr.bf16.mxu0 0
  %911 = vmatmul.mubr.bf16.gmra.mrb[0].mxu0 %v876
  %v912 = vpop.f32.mrb[0].mxu0
  %v913 = vadd.f32 %v848, %v912
  %v914 = vpop.f32.mrb[0].mxu0
  %v915 = vpop.f32.mrb[0].mxu0
  %v916 = vadd.f32 %v848, %v915
  %v917 = vpop.f32.mrb[0].mxu0
  %918 = vdwg.mxu0
  %v919 = vadd.f32 %v913, %v746
  %v920 = vadd.f32 %v916, %v747
  %v921 = vld [vmem:[%s12] sm:$0x1]
  %v922 = vld [vmem:[%s13] sm:$0x1]
  %v923 = vsel %vm76, %v919, 0.0
  %924 = vadd.xlane.f32.xlu0 %v923
  %v925 = vpop.xlane.xlu0 %924
  %v926 = vsel %vm76, %v920, 0.0
  %927 = vadd.xlane.f32.xlu0 %v926
  %v928 = vpop.xlane.xlu0 %927
  %v929 = vmul.f32 %v925, %v711
  %v930 = vmul.f32 %v928, %v711
  %v931 = vsub.f32 %v919, %v929
  %v932 = vsub.f32 %v920, %v930
  %v933 = vmul.f32 %v931, %v931
  %v934 = vmul.f32 %v932, %v932
  %v935 = vsel %vm76, %v933, 0.0
  %936 = vadd.xlane.f32.xlu0 %v935
  %v937 = vpop.xlane.xlu0 %936
  %v938 = vsel %vm76, %v934, 0.0
  %939 = vadd.xlane.f32.xlu0 %v938
  %v940 = vpop.xlane.xlu0 %939
  %v941 = vmul.f32 %v937, %v711
  %v942 = vmul.f32 %v940, %v711
  %v943 = vadd.f32 %v941, 1e-12
  %v944 = vadd.f32 %v942, 1e-12
  %v945 = vrsqrt.pop %v943
  %v946 = vrsqrt.pop %v944
  %v947 = vmul.f32 %v931, %v945
  %v948 = vmul.f32 %v932, %v946
  %v950 = vlaneseq
  %v951 = vshrl.u32 %v950, 7
  %v952 = vsub.s32 0, %v951
  %v953 = vrot.slane %v921, %v952
  %v955 = vmul.f32 %v947, %v953
  %v956 = vmul.f32 %v948, %v953
  %v958 = vlaneseq
  %v959 = vshrl.u32 %v958, 7
  %v960 = vsub.s32 0, %v959
  %v961 = vrot.slane %v922, %v960
  %v963 = vadd.f32 %v955, %v961
  %v964 = vadd.f32 %v956, %v961
  %965 = vst.msk [vmem:[%s14] sm:$0xff] %vm76, %v963
  %966 = vst.msk [vmem:[%s14 + $0x8] sm:$0xff] %vm76, %v964
  // Predicated region
  $region58: #{bert_classifies_forward.5} parent=0 // pred_check
    _
  $region59: #{bert_classifies_forward.5} parent=0 // pred_check_branch
    %968 = sbr.rel (0) target = $region61
  $region60: #{bert_classifies_forward.5} parent=0 // pred_region
    _
  $region61: #{bert_classifies_forward.5} parent=0 // pred_fallthru
    _
  // Predicated region
  $region62: #{bert_classifies_forward.5} parent=0 // pred_check
    _
  $region63: #{bert_classifies_forward.5} parent=0 // pred_check_branch
    %970 = sbr.rel (0) target = $region65
  $region64: #{bert_classifies_forward.5} parent=0 // pred_region
    _
  $region65: #{bert_classifies_forward.5} parent=0 // pred_fallthru
    _

</llo_original>
